<compile_context>
chip_gen: v6e
topology: v6e:2x2x1
jax: 0.10.0
libtpu: 0.0.40
codegen_flags: <defaults>
</compile_context>

<pallas_src>
import math

import jax
import jax.numpy as jnp
from jax import lax
from jax.experimental import pallas as pl
from jax.experimental.pallas import tpu as pltpu

BN_EPS = 1e-5
NPAD = 8      # batch rows padded to one f32 sublane tile
LANE = 128    # lane width for conv outputs / logits

_VMEM = pl.BlockSpec(memory_space=pltpu.MemorySpace.VMEM)


def _round_up(x, m):
    return (x + m - 1) // m * m


def _nbytes(shape, dtype):
    return int(math.prod(shape)) * jnp.dtype(dtype).itemsize


# --------------------------------------------------------------------------
# Fused forward builder
# --------------------------------------------------------------------------
def make_forward(layers, nc, batch, height, width):
    """Builds a jitted forward pass for a static (layers, nc, shapes) config."""
    assert batch <= NPAD, "demo kernel assumes batch <= 8 (one sublane tile)"
    assert max(layers) <= LANE and nc <= LANE
    n_blocks = len(layers) - 1
    ncpad = _round_up(nc, LANE)

    # Per-block static dims: (OH, OW, Cin, Cout, K_pad).
    dims = []
    h, w = height, width
    for i in range(n_blocks):
        assert h % 2 == 0 and w % 2 == 0, "even spatial dims assumed"
        oh, ow = h // 2, w // 2
        dims.append((oh, ow, layers[i], layers[i + 1],
                     _round_up(9 * layers[i], LANE)))
        h, w = oh, ow

    # ---------------------------- the kernel ------------------------------
    def kernel(*refs):
        # inputs: x, (w_packed, bias, gamma, beta) * n_blocks, lin_w, lin_b
        x_ref = refs[0]
        blk_refs = [refs[1 + 4 * i: 1 + 4 * (i + 1)] for i in range(n_blocks)]
        lw_ref = refs[1 + 4 * n_blocks]
        lb_ref = refs[2 + 4 * n_blocks]
        out_ref = refs[3 + 4 * n_blocks]
        nxt_refs = list(refs[4 + 4 * n_blocks:])      # (n_blocks - 1) buffers

        cur_in = x_ref            # padded bf16 input of the current block
        for i, (oh, ow, cin, cout, kpad) in enumerate(dims):
            w_ref, b_ref, g_ref, bt_ref = blk_refs[i]
            last = i == n_blocks - 1
            nxt = None if last else nxt_refs[i]
            rows = ow * NPAD
            kreal = 9 * cin

            # Hoisted per-block constants (review: no per-row re-broadcast).
            valid = (lax.broadcasted_iota(jnp.int32, (rows, LANE), 0)
                     % NPAD) < batch
            bias_b = jnp.broadcast_to(b_ref[...], (rows, LANE))
            filler = (jnp.zeros((ow, NPAD, kpad - kreal), jnp.float32)
                      if kpad > kreal else None)

            if not last:
                # Zero only the conv padding ring of the next block's input;
                # the interior is fully overwritten by the sweeps below.
                zrow = jnp.zeros((1, ow + 2, NPAD, cout), nxt.dtype)
                zcol = jnp.zeros((oh, 1, NPAD, cout), nxt.dtype)
                nxt[pl.ds(0, 1)] = zrow
                nxt[pl.ds(oh + 1, 1)] = zrow
                nxt[pl.ds(1, oh), pl.ds(0, 1)] = zcol
                nxt[pl.ds(1, oh), pl.ds(ow + 1, 1)] = zcol

            def build_lhs(ohi):
                # One (rows, K_pad) LHS: the 9 conv taps packed along the
                # contraction (lane) axis -> a single MXU matmul per row.
                taps = []
                for kh in range(3):
                    # TODO(synk): input rows overlap between ohi and ohi+1; a
                    # 3-row rolling window would cut these loads by ~1/3.
                    row = cur_in[2 * ohi + kh].astype(jnp.float32)  # (W+2,8,ci)
                    for kw in range(3):
                        t = row[kw:kw + 2 * ow]                     # (2ow,8,ci)
                        t = t.reshape(ow, 2, NPAD, cin)[:, 0]       # (ow,8,ci)
                        taps.append(t)
                if filler is not None:
                    taps.append(filler)
                lhs = jnp.concatenate(taps, axis=-1)                # (ow,8,K)
                return lhs.reshape(rows, -1).astype(jnp.bfloat16)

            def conv_body(ohi, carry):
                lhs = build_lhs(ohi)
                acc = jnp.dot(lhs, w_ref[...],
                              preferred_element_type=jnp.float32)  # (rows,128)
                r = jnp.maximum(acc + bias_b, 0.0)     # conv bias + ReLU (f32)
                rv = jnp.where(valid, r, 0.0)          # mask padded batch rows
                s = carry[0] + jnp.sum(rv, axis=0, keepdims=True)
                ss = carry[1] + jnp.sum(rv * rv, axis=0, keepdims=True)
                if last:
                    # global-average-pool numerator per batch row
                    pooled = carry[2] + rv.reshape(ow, NPAD, LANE).sum(axis=0)
                    return s, ss, pooled
                # Stash the pre-BN activation (real channels, bf16) in the
                # interior of the next block's padded input buffer.
                nxt[ohi + 1, pl.ds(1, ow), :, :] = (
                    r[:, :cout].reshape(ow, NPAD, cout).astype(nxt.dtype))
                return s, ss

            z1 = jnp.zeros((1, LANE), jnp.float32)
            if last:
                s, ss, pooled = lax.fori_loop(
                    0, oh, conv_body,
                    (z1, z1, jnp.zeros((NPAD, LANE), jnp.float32)))
            else:
                s, ss = lax.fori_loop(0, oh, conv_body, (z1, z1))

            # BatchNorm2d (training): biased variance over (N, H, W).
            # TODO(synk): single-pass E[x^2]-E[x]^2 in f32 cancels badly when
            # |mean| >> std; move to a two-pass/Welford variant before scaling.
            count = float(oh * ow * batch)
            mean = s * (1.0 / count)
            var = ss * (1.0 / count) - mean * mean
            scale = lax.rsqrt(var + BN_EPS) * g_ref[...]
            shift = bt_ref[...] - mean * scale

            if last:
                # Head: adaptive_avg_pool2d(1) + flatten + Linear, with the
                # last BN normalization folded into the (linear) pooling.
                pooled = pooled * (1.0 / float(oh * ow)) * scale + shift
                logits = jnp.dot(pooled.astype(jnp.bfloat16), lw_ref[...],
                                 preferred_element_type=jnp.float32)
                out_ref[...] = logits + lb_ref[...]
            else:
                scale_b = jnp.broadcast_to(
                    scale[:, :cout].reshape(1, 1, cout), (ow, NPAD, cout))
                shift_b = jnp.broadcast_to(
                    shift[:, :cout].reshape(1, 1, cout), (ow, NPAD, cout))

                def norm_body(ohi, carry):
                    # Normalize in place; padded batch rows are harmless (they
                    # are masked out of stats and out of the pooled head).
                    pre = nxt[ohi + 1, pl.ds(1, ow), :, :].astype(jnp.float32)
                    nxt[ohi + 1, pl.ds(1, ow), :, :] = (
                        (pre * scale_b + shift_b).astype(nxt.dtype))
                    return carry

                lax.fori_loop(0, oh, norm_body, 0)
                cur_in = nxt

    # ------------------------- pallas_call plumbing ------------------------
    h0p, w0p = height + 2, width + 2
    in_shapes = [(h0p, w0p, NPAD, layers[0])]
    in_dtypes = [jnp.bfloat16]
    for (oh, ow, cin, cout, kpad) in dims:
        in_shapes += [(kpad, LANE), (1, LANE), (1, LANE), (1, LANE)]
        in_dtypes += [jnp.bfloat16, jnp.float32, jnp.float32, jnp.float32]
    in_shapes += [(LANE, ncpad), (1, ncpad)]
    in_dtypes += [jnp.bfloat16, jnp.float32]

    scratch_shapes = [
        pltpu.VMEM((dims[i][0] + 2, dims[i][1] + 2, NPAD, dims[i][3]),
                   jnp.bfloat16)
        for i in range(n_blocks - 1)
    ]

    flops = 0
    for (oh, ow, cin, cout, kpad) in dims:
        flops += 2 * (oh * ow * NPAD) * kpad * LANE
    flops += 2 * NPAD * LANE * ncpad
    bytes_accessed = sum(_nbytes(s_, d_) for s_, d_ in zip(in_shapes, in_dtypes))
    bytes_accessed += _nbytes((NPAD, ncpad), jnp.float32)

    call = pl.pallas_call(
        kernel,
        out_shape=jax.ShapeDtypeStruct((NPAD, ncpad), jnp.float32),
        in_specs=[_VMEM] * (3 + 4 * n_blocks),
        out_specs=_VMEM,
        scratch_shapes=scratch_shapes,
        compiler_params=pltpu.CompilerParams(
            # Plenty for the demo.  TODO(synk): at production sizes raise this
            # on v5e/v6e (128 MiB physical) but cap around ~48 MiB on v7x
            # (64 MiB physical) once the M-axis grid lands.
            vmem_limit_bytes=32 * 1024 * 1024),
        cost_estimate=pl.CostEstimate(flops=flops,
                                      transcendentals=n_blocks * LANE,
                                      bytes_accessed=bytes_accessed),
    )

    @jax.jit
    def forward(x_nchw, packed):
        # NCHW -> (H, W, N, C) bf16; zero-pad: spatial +1 each side, batch -> 8
        # sublanes.  Channels stay at their real width (the conv contraction is
        # packed as (kh, kw, cin) inside the kernel).
        x_hwnc = jnp.transpose(x_nchw, (2, 3, 0, 1)).astype(jnp.bfloat16)
        xpad = jnp.zeros((h0p, w0p, NPAD, layers[0]), jnp.bfloat16)
        xpad = xpad.at[1:height + 1, 1:width + 1, :batch, :].set(x_hwnc)
        args = [xpad]
        for blk in packed["blocks"]:
            args.extend(blk)
        args.extend(packed["linear"])
        out = call(*args)
        return out[:batch, :nc]

    return forward


# --------------------------------------------------------------------------
# Parameters (PyTorch layout) + packing into the kernel layout
# --------------------------------------------------------------------------
def init_raw_params(layers, nc, key):
    """Deterministic synthetic params in PyTorch layout (f32)."""
    blocks = []
    for i in range(len(layers) - 1):
        ci, co = layers[i], layers[i + 1]
        key, kw, kb, kg, kbt = jax.random.split(key, 5)
        bound = 1.0 / math.sqrt(ci * 9)
        w = jax.random.uniform(kw, (co, ci, 3, 3), jnp.float32, -bound, bound)
        b = jax.random.uniform(kb, (co,), jnp.float32, -bound, bound)
        gamma = 1.0 + 0.1 * jax.random.normal(kg, (co,), jnp.float32)
        beta = 0.1 * jax.random.normal(kbt, (co,), jnp.float32)
        # TODO(synk): BatchNorm running_mean/running_var buffer updates
        # (training side effect) are not modeled; train-mode logits do not
        # depend on them.
        blocks.append((w, b, gamma, beta))
    c_last = layers[-1]
    key, kw, kb = jax.random.split(key, 3)
    bound = 1.0 / math.sqrt(c_last)
    lw = jax.random.uniform(kw, (nc, c_last), jnp.float32, -bound, bound)
    lb = jax.random.uniform(kb, (nc,), jnp.float32, -bound, bound)
    return {"blocks": blocks, "linear": (lw, lb)}


def pack_params(raw, layers, nc):
    """PyTorch-layout params -> kernel-layout arrays.

    Conv weights pack the whole 3x3 receptive field on the contraction axis:
    (Cout, Cin, kh, kw) -> row index (kh*3 + kw)*Cin + cin, zero-padded to
    (round_up(9*Cin, 128), 128), so the kernel issues ONE MXU matmul per conv
    output row instead of 9 per-tap matmuls.
    """
    ncpad = _round_up(nc, LANE)

    def pad_vec(v):
        return jnp.zeros((1, LANE), jnp.float32).at[0, :v.shape[0]].set(v)

    blocks = []
    for i, (w, b, gamma, beta) in enumerate(raw["blocks"]):
        ci, co = layers[i], layers[i + 1]
        kreal = 9 * ci
        kpad = _round_up(kreal, LANE)
        wk = jnp.transpose(w, (2, 3, 1, 0)).reshape(kreal, co)   # (9*ci, co)
        wkp = jnp.zeros((kpad, LANE), jnp.float32).at[:kreal, :co].set(wk)
        blocks.append((wkp.astype(jnp.bfloat16),
                       pad_vec(b), pad_vec(gamma), pad_vec(beta)))
    lw, lb = raw["linear"]
    c_last = layers[-1]
    lwp = jnp.zeros((LANE, ncpad), jnp.float32).at[:c_last, :nc].set(lw.T)
    lbp = jnp.zeros((1, ncpad), jnp.float32).at[0, :nc].set(lb)
    return {"blocks": blocks, "linear": (lwp.astype(jnp.bfloat16), lbp)}


# --------------------------------------------------------------------------
# Pure-JAX f32 reference (matches the PyTorch module's train-mode forward)
# --------------------------------------------------------------------------
def reference_forward(x_nchw, raw):
    a = x_nchw
    for (w, b, gamma, beta) in raw["blocks"]:
        a = lax.conv_general_dilated(
            a, w, window_strides=(2, 2), padding=((1, 1), (1, 1)),
            dimension_numbers=("NCHW", "OIHW", "NCHW"))
        a = jnp.maximum(a + b.reshape(1, -1, 1, 1), 0.0)
        mean = jnp.mean(a, axis=(0, 2, 3), keepdims=True)
        var = jnp.mean(jnp.square(a - mean), axis=(0, 2, 3), keepdims=True)
        a = (a - mean) * lax.rsqrt(var + BN_EPS)
        a = a * gamma.reshape(1, -1, 1, 1) + beta.reshape(1, -1, 1, 1)
    pooled = jnp.mean(a, axis=(2, 3))
    lw, lb = raw["linear"]
    return pooled @ lw.T + lb


# --------------------------------------------------------------------------
# main
# --------------------------------------------------------------------------
if __name__ == "__main__":
    # TODO(synk): the real SentinelResNet wraps an arbitrary pretrained
    # backbone M; its stripped `features` is modeled here as a small
    # conv/ReLU/BN stack with this channel plan.
    layers = [4, 8, 16]
    nc = 10
    batch, spatial = 2, 16

    key = jax.random.PRNGKey(0)
    key, kx = jax.random.split(key)
    x = jax.random.normal(kx, (batch, layers[0], spatial, spatial), jnp.float32)

    raw = init_raw_params(layers, nc, key)
    packed = pack_params(raw, layers, nc)

    forward = make_forward(layers, nc, batch, spatial, spatial)
    logits = jax.block_until_ready(forward(x, packed))

    assert logits.shape == (batch, nc), logits.shape
    assert bool(jnp.all(jnp.isfinite(logits)))

    # Tolerance absorbs bf16 MXU inputs, bf16 intermediate activation storage,
    # and the one-pass variance; tighten once those move to f32/two-pass.
    ref = reference_forward(x, raw)
    assert bool(jnp.allclose(logits, ref, atol=0.1, rtol=0.25)), (
        float(jnp.max(jnp.abs(logits - ref))))

    print("KERNEL_OK")
</pallas_src>

<mosaic_0001>
module attributes {stable_mosaic.version = 11 : i64} {
  func.func @kernel(%arg0: memref<18x18x8x4xbf16, #tpu.memory_space<vmem>>, %arg1: memref<128x128xbf16, #tpu.memory_space<vmem>>, %arg2: memref<1x128xf32, #tpu.memory_space<vmem>>, %arg3: memref<1x128xf32, #tpu.memory_space<vmem>>, %arg4: memref<1x128xf32, #tpu.memory_space<vmem>>, %arg5: memref<128x128xbf16, #tpu.memory_space<vmem>>, %arg6: memref<1x128xf32, #tpu.memory_space<vmem>>, %arg7: memref<1x128xf32, #tpu.memory_space<vmem>>, %arg8: memref<1x128xf32, #tpu.memory_space<vmem>>, %arg9: memref<128x128xbf16, #tpu.memory_space<vmem>>, %arg10: memref<1x128xf32, #tpu.memory_space<vmem>>, %arg11: memref<8x128xf32, #tpu.memory_space<vmem>>, %arg12: memref<10x10x8x8xbf16, #tpu.memory_space<vmem>>) attributes {dimension_semantics = [], scalar_prefetch = 0 : i64, scratch_operands = 1 : i64, tpu.core_type = #tpu.core_type<tc>} {
    %0 = tpu.iota {dimensions = array<i32: 0>} : vector<64x128xi32>
    %c8_i32 = arith.constant 8 : i32
    %c0_i32 = arith.constant 0 : i32
    %1 = arith.cmpi eq, %c8_i32, %c0_i32 : i32
    %c1_i32 = arith.constant 1 : i32
    %2 = arith.select %1, %c1_i32, %c8_i32 : i32
    %3 = vector.broadcast %2 : i32 to vector<64x128xi32>
    %4 = arith.remsi %0, %3 : vector<64x128xi32>
    %c0_i32_0 = arith.constant 0 : i32
    %5 = vector.broadcast %c0_i32_0 : i32 to vector<64x128xi32>
    %6 = arith.cmpi ne, %4, %5 : vector<64x128xi32>
    %c0_i32_1 = arith.constant 0 : i32
    %7 = vector.broadcast %c0_i32_1 : i32 to vector<64x128xi32>
    %8 = arith.cmpi slt, %4, %7 : vector<64x128xi32>
    %c0_i32_2 = arith.constant 0 : i32
    %9 = arith.cmpi slt, %2, %c0_i32_2 : i32
    %10 = vector.broadcast %9 : i1 to vector<64x128xi1>
    %11 = vector.broadcast %10 : vector<64x128xi1> to vector<64x128xi1>
    %12 = arith.xori %8, %11 : vector<64x128xi1>
    %13 = arith.andi %12, %6 : vector<64x128xi1>
    %14 = vector.broadcast %2 : i32 to vector<64x128xi32>
    %15 = arith.addi %4, %14 : vector<64x128xi32>
    %16 = arith.select %13, %15, %4 : vector<64x128xi1>, vector<64x128xi32>
    %c2_i32 = arith.constant 2 : i32
    %17 = vector.broadcast %c2_i32 : i32 to vector<64x128xi32>
    %18 = arith.cmpi slt, %16, %17 : vector<64x128xi32>
    %c0 = arith.constant 0 : index
    %c0_3 = arith.constant 0 : index
    %19 = vector.load %arg2[%c0, %c0_3] : memref<1x128xf32, #tpu.memory_space<vmem>>, vector<1x128xf32>
    %20 = vector.shape_cast %19 : vector<1x128xf32> to vector<1x128xf32>
    %21 = vector.broadcast %20 : vector<1x128xf32> to vector<64x128xf32>
    %cst = arith.constant 0.000000e+00 : f32
    %22 = vector.broadcast %cst : f32 to vector<8x8x92xf32>
    %cst_4 = arith.constant 0.000000e+00 : bf16
    %23 = vector.broadcast %cst_4 : bf16 to vector<1x10x8x8xbf16>
    %cst_5 = arith.constant 0.000000e+00 : bf16
    %24 = vector.broadcast %cst_5 : bf16 to vector<8x1x8x8xbf16>
    %c0_6 = arith.constant 0 : index
    %c0_7 = arith.constant 0 : index
    %c0_8 = arith.constant 0 : index
    %c0_9 = arith.constant 0 : index
    %25 = vector.load %arg12[%c0_6, %c0_7, %c0_8, %c0_9] : memref<10x10x8x8xbf16, #tpu.memory_space<vmem>>, vector<1x10x8x8xbf16>
    tpu.vector_store %arg12[%c0_6, %c0_7, %c0_8, %c0_9], %23 {strides = array<i32>} : memref<10x10x8x8xbf16, #tpu.memory_space<vmem>>, vector<1x10x8x8xbf16>,
    %c9 = arith.constant 9 : index
    %c0_10 = arith.constant 0 : index
    %c0_11 = arith.constant 0 : index
    %c0_12 = arith.constant 0 : index
    %26 = vector.load %arg12[%c9, %c0_10, %c0_11, %c0_12] : memref<10x10x8x8xbf16, #tpu.memory_space<vmem>>, vector<1x10x8x8xbf16>
    tpu.vector_store %arg12[%c9, %c0_10, %c0_11, %c0_12], %23 {strides = array<i32>} : memref<10x10x8x8xbf16, #tpu.memory_space<vmem>>, vector<1x10x8x8xbf16>,
    %c1 = arith.constant 1 : index
    %c0_13 = arith.constant 0 : index
    %c0_14 = arith.constant 0 : index
    %c0_15 = arith.constant 0 : index
    %27 = vector.load %arg12[%c1, %c0_13, %c0_14, %c0_15] : memref<10x10x8x8xbf16, #tpu.memory_space<vmem>>, vector<8x1x8x8xbf16>
    tpu.vector_store %arg12[%c1, %c0_13, %c0_14, %c0_15], %24 {strides = array<i32>} : memref<10x10x8x8xbf16, #tpu.memory_space<vmem>>, vector<8x1x8x8xbf16>,
    %c1_16 = arith.constant 1 : index
    %c9_17 = arith.constant 9 : index
    %c0_18 = arith.constant 0 : index
    %c0_19 = arith.constant 0 : index
    %28 = vector.load %arg12[%c1_16, %c9_17, %c0_18, %c0_19] : memref<10x10x8x8xbf16, #tpu.memory_space<vmem>>, vector<8x1x8x8xbf16>
    tpu.vector_store %arg12[%c1_16, %c9_17, %c0_18, %c0_19], %24 {strides = array<i32>} : memref<10x10x8x8xbf16, #tpu.memory_space<vmem>>, vector<8x1x8x8xbf16>,
    %cst_20 = arith.constant 0.000000e+00 : f32
    %29 = vector.broadcast %cst_20 : f32 to vector<1x128xf32>
    %c0_i32_21 = arith.constant 0 : i32
    %c8_i32_22 = arith.constant 8 : i32
    %30 = arith.addi %c0_i32_21, %c8_i32_22 : i32
    %c1_i32_23 = arith.constant 1 : i32
    %31:2 = scf.for %arg13 = %c0_i32_21 to %30 step %c1_i32_23 iter_args(%arg14 = %29, %arg15 = %29) -> (vector<1x128xf32>, vector<1x128xf32>)  : i32 {
      %c2_i32_66 = arith.constant 2 : i32
      %109 = arith.muli %c2_i32_66, %arg13 : i32
      %c0_i32_67 = arith.constant 0 : i32
      %110 = arith.addi %109, %c0_i32_67 : i32
      %111 = arith.index_cast %110 : i32 to index
      %c0_68 = arith.constant 0 : index
      %c0_69 = arith.constant 0 : index
      %c0_70 = arith.constant 0 : index
      %112 = vector.load %arg0[%111, %c0_68, %c0_69, %c0_70] : memref<18x18x8x4xbf16, #tpu.memory_space<vmem>>, vector<1x18x8x4xbf16>
      %113 = vector.shape_cast %112 : vector<1x18x8x4xbf16> to vector<18x8x4xbf16>
      %114 = arith.extf %113 : vector<18x8x4xbf16> to vector<18x8x4xf32>
      %115 = vector.extract_strided_slice %114 {offsets = [0, 0, 0], sizes = [16, 8, 4], strides = [1, 1, 1]} : vector<18x8x4xf32> to vector<16x8x4xf32>
      %116 = vector.shape_cast %115 : vector<16x8x4xf32> to vector<8x2x8x4xf32>
      %117 = vector.extract_strided_slice %116 {offsets = [0, 0, 0, 0], sizes = [8, 1, 8, 4], strides = [1, 1, 1, 1]} : vector<8x2x8x4xf32> to vector<8x1x8x4xf32>
      %118 = vector.shape_cast %117 : vector<8x1x8x4xf32> to vector<8x8x4xf32>
      %119 = vector.extract_strided_slice %114 {offsets = [1, 0, 0], sizes = [16, 8, 4], strides = [1, 1, 1]} : vector<18x8x4xf32> to vector<16x8x4xf32>
      %120 = vector.shape_cast %119 : vector<16x8x4xf32> to vector<8x2x8x4xf32>
      %121 = vector.extract_strided_slice %120 {offsets = [0, 0, 0, 0], sizes = [8, 1, 8, 4], strides = [1, 1, 1, 1]} : vector<8x2x8x4xf32> to vector<8x1x8x4xf32>
      %122 = vector.shape_cast %121 : vector<8x1x8x4xf32> to vector<8x8x4xf32>
      %123 = vector.extract_strided_slice %114 {offsets = [2, 0, 0], sizes = [16, 8, 4], strides = [1, 1, 1]} : vector<18x8x4xf32> to vector<16x8x4xf32>
      %124 = vector.shape_cast %123 : vector<16x8x4xf32> to vector<8x2x8x4xf32>
      %125 = vector.extract_strided_slice %124 {offsets = [0, 0, 0, 0], sizes = [8, 1, 8, 4], strides = [1, 1, 1, 1]} : vector<8x2x8x4xf32> to vector<8x1x8x4xf32>
      %126 = vector.shape_cast %125 : vector<8x1x8x4xf32> to vector<8x8x4xf32>
      %c2_i32_71 = arith.constant 2 : i32
      %127 = arith.muli %c2_i32_71, %arg13 : i32
      %c1_i32_72 = arith.constant 1 : i32
      %128 = arith.addi %127, %c1_i32_72 : i32
      %129 = arith.index_cast %128 : i32 to index
      %c0_73 = arith.constant 0 : index
      %c0_74 = arith.constant 0 : index
      %c0_75 = arith.constant 0 : index
      %130 = vector.load %arg0[%129, %c0_73, %c0_74, %c0_75] : memref<18x18x8x4xbf16, #tpu.memory_space<vmem>>, vector<1x18x8x4xbf16>
      %131 = vector.shape_cast %130 : vector<1x18x8x4xbf16> to vector<18x8x4xbf16>
      %132 = arith.extf %131 : vector<18x8x4xbf16> to vector<18x8x4xf32>
      %133 = vector.extract_strided_slice %132 {offsets = [0, 0, 0], sizes = [16, 8, 4], strides = [1, 1, 1]} : vector<18x8x4xf32> to vector<16x8x4xf32>
      %134 = vector.shape_cast %133 : vector<16x8x4xf32> to vector<8x2x8x4xf32>
      %135 = vector.extract_strided_slice %134 {offsets = [0, 0, 0, 0], sizes = [8, 1, 8, 4], strides = [1, 1, 1, 1]} : vector<8x2x8x4xf32> to vector<8x1x8x4xf32>
      %136 = vector.shape_cast %135 : vector<8x1x8x4xf32> to vector<8x8x4xf32>
      %137 = vector.extract_strided_slice %132 {offsets = [1, 0, 0], sizes = [16, 8, 4], strides = [1, 1, 1]} : vector<18x8x4xf32> to vector<16x8x4xf32>
      %138 = vector.shape_cast %137 : vector<16x8x4xf32> to vector<8x2x8x4xf32>
      %139 = vector.extract_strided_slice %138 {offsets = [0, 0, 0, 0], sizes = [8, 1, 8, 4], strides = [1, 1, 1, 1]} : vector<8x2x8x4xf32> to vector<8x1x8x4xf32>
      %140 = vector.shape_cast %139 : vector<8x1x8x4xf32> to vector<8x8x4xf32>
      %141 = vector.extract_strided_slice %132 {offsets = [2, 0, 0], sizes = [16, 8, 4], strides = [1, 1, 1]} : vector<18x8x4xf32> to vector<16x8x4xf32>
      %142 = vector.shape_cast %141 : vector<16x8x4xf32> to vector<8x2x8x4xf32>
      %143 = vector.extract_strided_slice %142 {offsets = [0, 0, 0, 0], sizes = [8, 1, 8, 4], strides = [1, 1, 1, 1]} : vector<8x2x8x4xf32> to vector<8x1x8x4xf32>
      %144 = vector.shape_cast %143 : vector<8x1x8x4xf32> to vector<8x8x4xf32>
      %c2_i32_76 = arith.constant 2 : i32
      %145 = arith.muli %c2_i32_76, %arg13 : i32
      %c2_i32_77 = arith.constant 2 : i32
      %146 = arith.addi %145, %c2_i32_77 : i32
      %147 = arith.index_cast %146 : i32 to index
      %c0_78 = arith.constant 0 : index
      %c0_79 = arith.constant 0 : index
      %c0_80 = arith.constant 0 : index
      %148 = vector.load %arg0[%147, %c0_78, %c0_79, %c0_80] : memref<18x18x8x4xbf16, #tpu.memory_space<vmem>>, vector<1x18x8x4xbf16>
      %149 = vector.shape_cast %148 : vector<1x18x8x4xbf16> to vector<18x8x4xbf16>
      %150 = arith.extf %149 : vector<18x8x4xbf16> to vector<18x8x4xf32>
      %151 = vector.extract_strided_slice %150 {offsets = [0, 0, 0], sizes = [16, 8, 4], strides = [1, 1, 1]} : vector<18x8x4xf32> to vector<16x8x4xf32>
      %152 = vector.shape_cast %151 : vector<16x8x4xf32> to vector<8x2x8x4xf32>
      %153 = vector.extract_strided_slice %152 {offsets = [0, 0, 0, 0], sizes = [8, 1, 8, 4], strides = [1, 1, 1, 1]} : vector<8x2x8x4xf32> to vector<8x1x8x4xf32>
      %154 = vector.shape_cast %153 : vector<8x1x8x4xf32> to vector<8x8x4xf32>
      %155 = vector.extract_strided_slice %150 {offsets = [1, 0, 0], sizes = [16, 8, 4], strides = [1, 1, 1]} : vector<18x8x4xf32> to vector<16x8x4xf32>
      %156 = vector.shape_cast %155 : vector<16x8x4xf32> to vector<8x2x8x4xf32>
      %157 = vector.extract_strided_slice %156 {offsets = [0, 0, 0, 0], sizes = [8, 1, 8, 4], strides = [1, 1, 1, 1]} : vector<8x2x8x4xf32> to vector<8x1x8x4xf32>
      %158 = vector.shape_cast %157 : vector<8x1x8x4xf32> to vector<8x8x4xf32>
      %159 = vector.extract_strided_slice %150 {offsets = [2, 0, 0], sizes = [16, 8, 4], strides = [1, 1, 1]} : vector<18x8x4xf32> to vector<16x8x4xf32>
      %160 = vector.shape_cast %159 : vector<16x8x4xf32> to vector<8x2x8x4xf32>
      %161 = vector.extract_strided_slice %160 {offsets = [0, 0, 0, 0], sizes = [8, 1, 8, 4], strides = [1, 1, 1, 1]} : vector<8x2x8x4xf32> to vector<8x1x8x4xf32>
      %162 = vector.shape_cast %161 : vector<8x1x8x4xf32> to vector<8x8x4xf32>
      %163 = tpu.concatenate %118, %122, %126, %136, %140, %144, %154, %158, %162, %22 in 2 : vector<8x8x4xf32>, vector<8x8x4xf32>, vector<8x8x4xf32>, vector<8x8x4xf32>, vector<8x8x4xf32>, vector<8x8x4xf32>, vector<8x8x4xf32>, vector<8x8x4xf32>, vector<8x8x4xf32>, vector<8x8x92xf32> -> vector<8x8x128xf32>
      %164 = vector.shape_cast %163 : vector<8x8x128xf32> to vector<64x128xf32>
      %165 = arith.truncf %164 : vector<64x128xf32> to vector<64x128xbf16>
      %c0_81 = arith.constant 0 : index
      %c0_82 = arith.constant 0 : index
      %166 = vector.load %arg1[%c0_81, %c0_82] : memref<128x128xbf16, #tpu.memory_space<vmem>>, vector<128x128xbf16>
      %cst_83 = arith.constant dense<0.000000e+00> : vector<64x128xf32>
      %167 = tpu.matmul %165, %166, %cst_83 {dimension_numbers = #tpu.dot_dimension_numbers<[1], [0], [0], [1], [0, 0, 1, 1], [], []>} : vector<64x128xbf16>, vector<128x128xbf16>, vector<64x128xf32> -> vector<64x128xf32>
      %168 = arith.addf %167, %21 : vector<64x128xf32>
      %cst_84 = arith.constant 0.000000e+00 : f32
      %169 = vector.broadcast %cst_84 : f32 to vector<64x128xf32>
      %170 = arith.maximumf %168, %169 : vector<64x128xf32>
      %cst_85 = arith.constant 0.000000e+00 : f32
      %171 = vector.broadcast %cst_85 : f32 to vector<64x128xf32>
      %172 = arith.select %18, %170, %171 : vector<64x128xi1>, vector<64x128xf32>
      %cst_86 = arith.constant dense<0.000000e+00> : vector<128xf32>
      %173 = vector.multi_reduction <add>, %172, %cst_86 [0] : vector<64x128xf32> to vector<128xf32>
      %174 = vector.shape_cast %173 : vector<128xf32> to vector<1x128xf32>
      %175 = arith.addf %arg14, %174 : vector<1x128xf32>
      %176 = arith.mulf %172, %172 : vector<64x128xf32>
      %cst_87 = arith.constant dense<0.000000e+00> : vector<128xf32>
      %177 = vector.multi_reduction <add>, %176, %cst_87 [0] : vector<64x128xf32> to vector<128xf32>
      %178 = vector.shape_cast %177 : vector<128xf32> to vector<1x128xf32>
      %179 = arith.addf %arg15, %178 : vector<1x128xf32>
      %180 = vector.extract_strided_slice %170 {offsets = [0, 0], sizes = [64, 8], strides = [1, 1]} : vector<64x128xf32> to vector<64x8xf32>
      %181 = vector.shape_cast %180 : vector<64x8xf32> to vector<8x8x8xf32>
      %182 = arith.truncf %181 : vector<8x8x8xf32> to vector<8x8x8xbf16>
      %c1_i32_88 = arith.constant 1 : i32
      %183 = arith.addi %arg13, %c1_i32_88 : i32
      %184 = arith.index_cast %183 : i32 to index
      %c1_89 = arith.constant 1 : index
      %c0_90 = arith.constant 0 : index
      %c0_91 = arith.constant 0 : index
      %185 = vector.load %arg12[%184, %c1_89, %c0_90, %c0_91] : memref<10x10x8x8xbf16, #tpu.memory_space<vmem>>, vector<1x8x8x8xbf16>
      %186 = vector.shape_cast %185 : vector<1x8x8x8xbf16> to vector<8x8x8xbf16>
      %187 = vector.shape_cast %182 : vector<8x8x8xbf16> to vector<1x8x8x8xbf16>
      tpu.vector_store %arg12[%184, %c1_89, %c0_90, %c0_91], %187 {strides = array<i32>} : memref<10x10x8x8xbf16, #tpu.memory_space<vmem>>, vector<1x8x8x8xbf16>,
      scf.yield %175, %179 : vector<1x128xf32>, vector<1x128xf32>
    }
    %c8_i32_24 = arith.constant 8 : i32
    %cst_25 = arith.constant 7.812500e-03 : f32
    %32 = vector.broadcast %cst_25 : f32 to vector<1x128xf32>
    %33 = arith.mulf %31#0, %32 : vector<1x128xf32>
    %cst_26 = arith.constant 7.812500e-03 : f32
    %34 = vector.broadcast %cst_26 : f32 to vector<1x128xf32>
    %35 = arith.mulf %31#1, %34 : vector<1x128xf32>
    %36 = arith.mulf %33, %33 : vector<1x128xf32>
    %37 = arith.subf %35, %36 : vector<1x128xf32>
    %cst_27 = arith.constant 9.99999974E-6 : f32
    %38 = vector.broadcast %cst_27 : f32 to vector<1x128xf32>
    %39 = arith.addf %37, %38 : vector<1x128xf32>
    %40 = math.rsqrt %39 : vector<1x128xf32>
    %c0_28 = arith.constant 0 : index
    %c0_29 = arith.constant 0 : index
    %41 = vector.load %arg3[%c0_28, %c0_29] : memref<1x128xf32, #tpu.memory_space<vmem>>, vector<1x128xf32>
    %42 = arith.mulf %40, %41 : vector<1x128xf32>
    %c0_30 = arith.constant 0 : index
    %c0_31 = arith.constant 0 : index
    %43 = vector.load %arg4[%c0_30, %c0_31] : memref<1x128xf32, #tpu.memory_space<vmem>>, vector<1x128xf32>
    %44 = arith.mulf %33, %42 : vector<1x128xf32>
    %45 = arith.subf %43, %44 : vector<1x128xf32>
    %46 = vector.extract_strided_slice %42 {offsets = [0, 0], sizes = [1, 8], strides = [1, 1]} : vector<1x128xf32> to vector<1x8xf32>
    %47 = vector.shape_cast %46 : vector<1x8xf32> to vector<1x1x8xf32>
    %48 = vector.shape_cast %47 : vector<1x1x8xf32> to vector<1x1x8xf32>
    %49 = vector.broadcast %48 : vector<1x1x8xf32> to vector<8x8x8xf32>
    %50 = vector.extract_strided_slice %45 {offsets = [0, 0], sizes = [1, 8], strides = [1, 1]} : vector<1x128xf32> to vector<1x8xf32>
    %51 = vector.shape_cast %50 : vector<1x8xf32> to vector<1x1x8xf32>
    %52 = vector.shape_cast %51 : vector<1x1x8xf32> to vector<1x1x8xf32>
    %53 = vector.broadcast %52 : vector<1x1x8xf32> to vector<8x8x8xf32>
    %c0_i32_32 = arith.constant 0 : i32
    %c8_i32_33 = arith.constant 8 : i32
    %54 = arith.addi %c0_i32_32, %c8_i32_33 : i32
    %c1_i32_34 = arith.constant 1 : i32
    scf.for %arg13 = %c0_i32_32 to %54 step %c1_i32_34  : i32 {
      %c1_i32_66 = arith.constant 1 : i32
      %109 = arith.addi %arg13, %c1_i32_66 : i32
      %110 = arith.index_cast %109 : i32 to index
      %c1_67 = arith.constant 1 : index
      %c0_68 = arith.constant 0 : index
      %c0_69 = arith.constant 0 : index
      %111 = vector.load %arg12[%110, %c1_67, %c0_68, %c0_69] : memref<10x10x8x8xbf16, #tpu.memory_space<vmem>>, vector<1x8x8x8xbf16>
      %112 = vector.shape_cast %111 : vector<1x8x8x8xbf16> to vector<8x8x8xbf16>
      %113 = arith.extf %112 : vector<8x8x8xbf16> to vector<8x8x8xf32>
      %114 = arith.mulf %113, %49 : vector<8x8x8xf32>
      %115 = arith.addf %114, %53 : vector<8x8x8xf32>
      %116 = arith.truncf %115 : vector<8x8x8xf32> to vector<8x8x8xbf16>
      %c1_i32_70 = arith.constant 1 : i32
      %117 = arith.addi %arg13, %c1_i32_70 : i32
      %118 = arith.index_cast %117 : i32 to index
      %c1_71 = arith.constant 1 : index
      %c0_72 = arith.constant 0 : index
      %c0_73 = arith.constant 0 : index
      %119 = vector.load %arg12[%118, %c1_71, %c0_72, %c0_73] : memref<10x10x8x8xbf16, #tpu.memory_space<vmem>>, vector<1x8x8x8xbf16>
      %120 = vector.shape_cast %119 : vector<1x8x8x8xbf16> to vector<8x8x8xbf16>
      %121 = vector.shape_cast %116 : vector<8x8x8xbf16> to vector<1x8x8x8xbf16>
      tpu.vector_store %arg12[%118, %c1_71, %c0_72, %c0_73], %121 {strides = array<i32>} : memref<10x10x8x8xbf16, #tpu.memory_space<vmem>>, vector<1x8x8x8xbf16>,
    }
    %c8_i32_35 = arith.constant 8 : i32
    %55 = tpu.iota {dimensions = array<i32: 0>} : vector<32x128xi32>
    %c8_i32_36 = arith.constant 8 : i32
    %c0_i32_37 = arith.constant 0 : i32
    %56 = arith.cmpi eq, %c8_i32_36, %c0_i32_37 : i32
    %c1_i32_38 = arith.constant 1 : i32
    %57 = arith.select %56, %c1_i32_38, %c8_i32_36 : i32
    %58 = vector.broadcast %57 : i32 to vector<32x128xi32>
    %59 = arith.remsi %55, %58 : vector<32x128xi32>
    %c0_i32_39 = arith.constant 0 : i32
    %60 = vector.broadcast %c0_i32_39 : i32 to vector<32x128xi32>
    %61 = arith.cmpi ne, %59, %60 : vector<32x128xi32>
    %c0_i32_40 = arith.constant 0 : i32
    %62 = vector.broadcast %c0_i32_40 : i32 to vector<32x128xi32>
    %63 = arith.cmpi slt, %59, %62 : vector<32x128xi32>
    %c0_i32_41 = arith.constant 0 : i32
    %64 = arith.cmpi slt, %57, %c0_i32_41 : i32
    %65 = vector.broadcast %64 : i1 to vector<32x128xi1>
    %66 = vector.broadcast %65 : vector<32x128xi1> to vector<32x128xi1>
    %67 = arith.xori %63, %66 : vector<32x128xi1>
    %68 = arith.andi %67, %61 : vector<32x128xi1>
    %69 = vector.broadcast %57 : i32 to vector<32x128xi32>
    %70 = arith.addi %59, %69 : vector<32x128xi32>
    %71 = arith.select %68, %70, %59 : vector<32x128xi1>, vector<32x128xi32>
    %c2_i32_42 = arith.constant 2 : i32
    %72 = vector.broadcast %c2_i32_42 : i32 to vector<32x128xi32>
    %73 = arith.cmpi slt, %71, %72 : vector<32x128xi32>
    %c0_43 = arith.constant 0 : index
    %c0_44 = arith.constant 0 : index
    %74 = vector.load %arg6[%c0_43, %c0_44] : memref<1x128xf32, #tpu.memory_space<vmem>>, vector<1x128xf32>
    %75 = vector.shape_cast %74 : vector<1x128xf32> to vector<1x128xf32>
    %76 = vector.broadcast %75 : vector<1x128xf32> to vector<32x128xf32>
    %cst_45 = arith.constant 0.000000e+00 : f32
    %77 = vector.broadcast %cst_45 : f32 to vector<4x8x56xf32>
    %cst_46 = arith.constant 0.000000e+00 : f32
    %78 = vector.broadcast %cst_46 : f32 to vector<1x128xf32>
    %cst_47 = arith.constant 0.000000e+00 : f32
    %79 = vector.broadcast %cst_47 : f32 to vector<8x128xf32>
    %c0_i32_48 = arith.constant 0 : i32
    %c4_i32 = arith.constant 4 : i32
    %80 = arith.addi %c0_i32_48, %c4_i32 : i32
    %c1_i32_49 = arith.constant 1 : i32
    %81:3 = scf.for %arg13 = %c0_i32_48 to %80 step %c1_i32_49 iter_args(%arg14 = %78, %arg15 = %78, %arg16 = %79) -> (vector<1x128xf32>, vector<1x128xf32>, vector<8x128xf32>)  : i32 {
      %c2_i32_66 = arith.constant 2 : i32
      %109 = arith.muli %c2_i32_66, %arg13 : i32
      %c0_i32_67 = arith.constant 0 : i32
      %110 = arith.addi %109, %c0_i32_67 : i32
      %111 = arith.index_cast %110 : i32 to index
      %c0_68 = arith.constant 0 : index
      %c0_69 = arith.constant 0 : index
      %c0_70 = arith.constant 0 : index
      %112 = vector.load %arg12[%111, %c0_68, %c0_69, %c0_70] : memref<10x10x8x8xbf16, #tpu.memory_space<vmem>>, vector<1x10x8x8xbf16>
      %113 = vector.shape_cast %112 : vector<1x10x8x8xbf16> to vector<10x8x8xbf16>
      %114 = arith.extf %113 : vector<10x8x8xbf16> to vector<10x8x8xf32>
      %115 = vector.extract_strided_slice %114 {offsets = [0, 0, 0], sizes = [8, 8, 8], strides = [1, 1, 1]} : vector<10x8x8xf32> to vector<8x8x8xf32>
      %116 = vector.shape_cast %115 : vector<8x8x8xf32> to vector<4x2x8x8xf32>
      %117 = vector.extract_strided_slice %116 {offsets = [0, 0, 0, 0], sizes = [4, 1, 8, 8], strides = [1, 1, 1, 1]} : vector<4x2x8x8xf32> to vector<4x1x8x8xf32>
      %118 = vector.shape_cast %117 : vector<4x1x8x8xf32> to vector<4x8x8xf32>
      %119 = vector.extract_strided_slice %114 {offsets = [1, 0, 0], sizes = [8, 8, 8], strides = [1, 1, 1]} : vector<10x8x8xf32> to vector<8x8x8xf32>
      %120 = vector.shape_cast %119 : vector<8x8x8xf32> to vector<4x2x8x8xf32>
      %121 = vector.extract_strided_slice %120 {offsets = [0, 0, 0, 0], sizes = [4, 1, 8, 8], strides = [1, 1, 1, 1]} : vector<4x2x8x8xf32> to vector<4x1x8x8xf32>
      %122 = vector.shape_cast %121 : vector<4x1x8x8xf32> to vector<4x8x8xf32>
      %123 = vector.extract_strided_slice %114 {offsets = [2, 0, 0], sizes = [8, 8, 8], strides = [1, 1, 1]} : vector<10x8x8xf32> to vector<8x8x8xf32>
      %124 = vector.shape_cast %123 : vector<8x8x8xf32> to vector<4x2x8x8xf32>
      %125 = vector.extract_strided_slice %124 {offsets = [0, 0, 0, 0], sizes = [4, 1, 8, 8], strides = [1, 1, 1, 1]} : vector<4x2x8x8xf32> to vector<4x1x8x8xf32>
      %126 = vector.shape_cast %125 : vector<4x1x8x8xf32> to vector<4x8x8xf32>
      %c2_i32_71 = arith.constant 2 : i32
      %127 = arith.muli %c2_i32_71, %arg13 : i32
      %c1_i32_72 = arith.constant 1 : i32
      %128 = arith.addi %127, %c1_i32_72 : i32
      %129 = arith.index_cast %128 : i32 to index
      %c0_73 = arith.constant 0 : index
      %c0_74 = arith.constant 0 : index
      %c0_75 = arith.constant 0 : index
      %130 = vector.load %arg12[%129, %c0_73, %c0_74, %c0_75] : memref<10x10x8x8xbf16, #tpu.memory_space<vmem>>, vector<1x10x8x8xbf16>
      %131 = vector.shape_cast %130 : vector<1x10x8x8xbf16> to vector<10x8x8xbf16>
      %132 = arith.extf %131 : vector<10x8x8xbf16> to vector<10x8x8xf32>
      %133 = vector.extract_strided_slice %132 {offsets = [0, 0, 0], sizes = [8, 8, 8], strides = [1, 1, 1]} : vector<10x8x8xf32> to vector<8x8x8xf32>
      %134 = vector.shape_cast %133 : vector<8x8x8xf32> to vector<4x2x8x8xf32>
      %135 = vector.extract_strided_slice %134 {offsets = [0, 0, 0, 0], sizes = [4, 1, 8, 8], strides = [1, 1, 1, 1]} : vector<4x2x8x8xf32> to vector<4x1x8x8xf32>
      %136 = vector.shape_cast %135 : vector<4x1x8x8xf32> to vector<4x8x8xf32>
      %137 = vector.extract_strided_slice %132 {offsets = [1, 0, 0], sizes = [8, 8, 8], strides = [1, 1, 1]} : vector<10x8x8xf32> to vector<8x8x8xf32>
      %138 = vector.shape_cast %137 : vector<8x8x8xf32> to vector<4x2x8x8xf32>
      %139 = vector.extract_strided_slice %138 {offsets = [0, 0, 0, 0], sizes = [4, 1, 8, 8], strides = [1, 1, 1, 1]} : vector<4x2x8x8xf32> to vector<4x1x8x8xf32>
      %140 = vector.shape_cast %139 : vector<4x1x8x8xf32> to vector<4x8x8xf32>
      %141 = vector.extract_strided_slice %132 {offsets = [2, 0, 0], sizes = [8, 8, 8], strides = [1, 1, 1]} : vector<10x8x8xf32> to vector<8x8x8xf32>
      %142 = vector.shape_cast %141 : vector<8x8x8xf32> to vector<4x2x8x8xf32>
      %143 = vector.extract_strided_slice %142 {offsets = [0, 0, 0, 0], sizes = [4, 1, 8, 8], strides = [1, 1, 1, 1]} : vector<4x2x8x8xf32> to vector<4x1x8x8xf32>
      %144 = vector.shape_cast %143 : vector<4x1x8x8xf32> to vector<4x8x8xf32>
      %c2_i32_76 = arith.constant 2 : i32
      %145 = arith.muli %c2_i32_76, %arg13 : i32
      %c2_i32_77 = arith.constant 2 : i32
      %146 = arith.addi %145, %c2_i32_77 : i32
      %147 = arith.index_cast %146 : i32 to index
      %c0_78 = arith.constant 0 : index
      %c0_79 = arith.constant 0 : index
      %c0_80 = arith.constant 0 : index
      %148 = vector.load %arg12[%147, %c0_78, %c0_79, %c0_80] : memref<10x10x8x8xbf16, #tpu.memory_space<vmem>>, vector<1x10x8x8xbf16>
      %149 = vector.shape_cast %148 : vector<1x10x8x8xbf16> to vector<10x8x8xbf16>
      %150 = arith.extf %149 : vector<10x8x8xbf16> to vector<10x8x8xf32>
      %151 = vector.extract_strided_slice %150 {offsets = [0, 0, 0], sizes = [8, 8, 8], strides = [1, 1, 1]} : vector<10x8x8xf32> to vector<8x8x8xf32>
      %152 = vector.shape_cast %151 : vector<8x8x8xf32> to vector<4x2x8x8xf32>
      %153 = vector.extract_strided_slice %152 {offsets = [0, 0, 0, 0], sizes = [4, 1, 8, 8], strides = [1, 1, 1, 1]} : vector<4x2x8x8xf32> to vector<4x1x8x8xf32>
      %154 = vector.shape_cast %153 : vector<4x1x8x8xf32> to vector<4x8x8xf32>
      %155 = vector.extract_strided_slice %150 {offsets = [1, 0, 0], sizes = [8, 8, 8], strides = [1, 1, 1]} : vector<10x8x8xf32> to vector<8x8x8xf32>
      %156 = vector.shape_cast %155 : vector<8x8x8xf32> to vector<4x2x8x8xf32>
      %157 = vector.extract_strided_slice %156 {offsets = [0, 0, 0, 0], sizes = [4, 1, 8, 8], strides = [1, 1, 1, 1]} : vector<4x2x8x8xf32> to vector<4x1x8x8xf32>
      %158 = vector.shape_cast %157 : vector<4x1x8x8xf32> to vector<4x8x8xf32>
      %159 = vector.extract_strided_slice %150 {offsets = [2, 0, 0], sizes = [8, 8, 8], strides = [1, 1, 1]} : vector<10x8x8xf32> to vector<8x8x8xf32>
      %160 = vector.shape_cast %159 : vector<8x8x8xf32> to vector<4x2x8x8xf32>
      %161 = vector.extract_strided_slice %160 {offsets = [0, 0, 0, 0], sizes = [4, 1, 8, 8], strides = [1, 1, 1, 1]} : vector<4x2x8x8xf32> to vector<4x1x8x8xf32>
      %162 = vector.shape_cast %161 : vector<4x1x8x8xf32> to vector<4x8x8xf32>
      %163 = tpu.concatenate %118, %122, %126, %136, %140, %144, %154, %158, %162, %77 in 2 : vector<4x8x8xf32>, vector<4x8x8xf32>, vector<4x8x8xf32>, vector<4x8x8xf32>, vector<4x8x8xf32>, vector<4x8x8xf32>, vector<4x8x8xf32>, vector<4x8x8xf32>, vector<4x8x8xf32>, vector<4x8x56xf32> -> vector<4x8x128xf32>
      %164 = vector.shape_cast %163 : vector<4x8x128xf32> to vector<32x128xf32>
      %165 = arith.truncf %164 : vector<32x128xf32> to vector<32x128xbf16>
      %c0_81 = arith.constant 0 : index
      %c0_82 = arith.constant 0 : index
      %166 = vector.load %arg5[%c0_81, %c0_82] : memref<128x128xbf16, #tpu.memory_space<vmem>>, vector<128x128xbf16>
      %cst_83 = arith.constant dense<0.000000e+00> : vector<32x128xf32>
      %167 = tpu.matmul %165, %166, %cst_83 {dimension_numbers = #tpu.dot_dimension_numbers<[1], [0], [0], [1], [0, 0, 1, 1], [], []>} : vector<32x128xbf16>, vector<128x128xbf16>, vector<32x128xf32> -> vector<32x128xf32>
      %168 = arith.addf %167, %76 : vector<32x128xf32>
      %cst_84 = arith.constant 0.000000e+00 : f32
      %169 = vector.broadcast %cst_84 : f32 to vector<32x128xf32>
      %170 = arith.maximumf %168, %169 : vector<32x128xf32>
      %cst_85 = arith.constant 0.000000e+00 : f32
      %171 = vector.broadcast %cst_85 : f32 to vector<32x128xf32>
      %172 = arith.select %73, %170, %171 : vector<32x128xi1>, vector<32x128xf32>
      %cst_86 = arith.constant dense<0.000000e+00> : vector<128xf32>
      %173 = vector.multi_reduction <add>, %172, %cst_86 [0] : vector<32x128xf32> to vector<128xf32>
      %174 = vector.shape_cast %173 : vector<128xf32> to vector<1x128xf32>
      %175 = arith.addf %arg14, %174 : vector<1x128xf32>
      %176 = arith.mulf %172, %172 : vector<32x128xf32>
      %cst_87 = arith.constant dense<0.000000e+00> : vector<128xf32>
      %177 = vector.multi_reduction <add>, %176, %cst_87 [0] : vector<32x128xf32> to vector<128xf32>
      %178 = vector.shape_cast %177 : vector<128xf32> to vector<1x128xf32>
      %179 = arith.addf %arg15, %178 : vector<1x128xf32>
      %180 = vector.shape_cast %172 : vector<32x128xf32> to vector<4x8x128xf32>
      %cst_88 = arith.constant dense<0.000000e+00> : vector<8x128xf32>
      %181 = vector.multi_reduction <add>, %180, %cst_88 [0] : vector<4x8x128xf32> to vector<8x128xf32>
      %182 = arith.addf %arg16, %181 : vector<8x128xf32>
      scf.yield %175, %179, %182 : vector<1x128xf32>, vector<1x128xf32>, vector<8x128xf32>
    }
    %c4_i32_50 = arith.constant 4 : i32
    %cst_51 = arith.constant 3.125000e-02 : f32
    %82 = vector.broadcast %cst_51 : f32 to vector<1x128xf32>
    %83 = arith.mulf %81#0, %82 : vector<1x128xf32>
    %cst_52 = arith.constant 3.125000e-02 : f32
    %84 = vector.broadcast %cst_52 : f32 to vector<1x128xf32>
    %85 = arith.mulf %81#1, %84 : vector<1x128xf32>
    %86 = arith.mulf %83, %83 : vector<1x128xf32>
    %87 = arith.subf %85, %86 : vector<1x128xf32>
    %cst_53 = arith.constant 9.99999974E-6 : f32
    %88 = vector.broadcast %cst_53 : f32 to vector<1x128xf32>
    %89 = arith.addf %87, %88 : vector<1x128xf32>
    %90 = math.rsqrt %89 : vector<1x128xf32>
    %c0_54 = arith.constant 0 : index
    %c0_55 = arith.constant 0 : index
    %91 = vector.load %arg7[%c0_54, %c0_55] : memref<1x128xf32, #tpu.memory_space<vmem>>, vector<1x128xf32>
    %92 = arith.mulf %90, %91 : vector<1x128xf32>
    %c0_56 = arith.constant 0 : index
    %c0_57 = arith.constant 0 : index
    %93 = vector.load %arg8[%c0_56, %c0_57] : memref<1x128xf32, #tpu.memory_space<vmem>>, vector<1x128xf32>
    %94 = arith.mulf %83, %92 : vector<1x128xf32>
    %95 = arith.subf %93, %94 : vector<1x128xf32>
    %cst_58 = arith.constant 6.250000e-02 : f32
    %96 = vector.broadcast %cst_58 : f32 to vector<8x128xf32>
    %97 = arith.mulf %81#2, %96 : vector<8x128xf32>
    %98 = vector.broadcast %92 : vector<1x128xf32> to vector<8x128xf32>
    %99 = arith.mulf %97, %98 : vector<8x128xf32>
    %100 = vector.broadcast %95 : vector<1x128xf32> to vector<8x128xf32>
    %101 = arith.addf %99, %100 : vector<8x128xf32>
    %102 = arith.truncf %101 : vector<8x128xf32> to vector<8x128xbf16>
    %c0_59 = arith.constant 0 : index
    %c0_60 = arith.constant 0 : index
    %103 = vector.load %arg9[%c0_59, %c0_60] : memref<128x128xbf16, #tpu.memory_space<vmem>>, vector<128x128xbf16>
    %cst_61 = arith.constant dense<0.000000e+00> : vector<8x128xf32>
    %104 = tpu.matmul %102, %103, %cst_61 {dimension_numbers = #tpu.dot_dimension_numbers<[1], [0], [0], [1], [0, 0, 1, 1], [], []>} : vector<8x128xbf16>, vector<128x128xbf16>, vector<8x128xf32> -> vector<8x128xf32>
    %c0_62 = arith.constant 0 : index
    %c0_63 = arith.constant 0 : index
    %105 = vector.load %arg10[%c0_62, %c0_63] : memref<1x128xf32, #tpu.memory_space<vmem>>, vector<1x128xf32>
    %106 = vector.broadcast %105 : vector<1x128xf32> to vector<8x128xf32>
    %107 = arith.addf %104, %106 : vector<8x128xf32>
    %c0_64 = arith.constant 0 : index
    %c0_65 = arith.constant 0 : index
    %108 = vector.load %arg11[%c0_64, %c0_65] : memref<8x128xf32, #tpu.memory_space<vmem>>, vector<8x128xf32>
    tpu.vector_store %arg11[%c0_64, %c0_65], %107 {strides = array<i32>} : memref<8x128xf32, #tpu.memory_space<vmem>>, vector<8x128xf32>,
    return
  }
}

</mosaic_0001>

<llo_original>
// kernel: forward.1
$region0: #{forward.1}
  #allocation0 [shape = 'u32[]', space=smem, size = 0x4, offset = 0x4, fixed_abs, tag = 'smem constant byte address 0x4 - core index']
  #allocation1 [shape = 'u32[144,128]{1,0:T(1,128)}', space=vmem, size = 0x12000, scoped, tag = 'internal scratch']
  #allocation2 [shape = 'bf16[10,10,8,8]{3,2,1,0:T(8,128)(2,1)}', space=vmem, size = 0x32000, scoped, tag = 'scratch operand']
  %s0 = inlined_call_operand.vmem [shape: bf16[18,18,8,4], index: 0, kind: input, shape index: {}]
  %s1 = inlined_call_operand.vmem [shape: bf16[128,128], index: 1, kind: input, shape index: {}]
  %s2 = inlined_call_operand.vmem [shape: f32[1,128], index: 2, kind: input, shape index: {}]
  %s3 = inlined_call_operand.vmem [shape: f32[1,128], index: 3, kind: input, shape index: {}]
  %s4 = inlined_call_operand.vmem [shape: f32[1,128], index: 4, kind: input, shape index: {}]
  %s5 = inlined_call_operand.vmem [shape: bf16[128,128], index: 5, kind: input, shape index: {}]
  %s6 = inlined_call_operand.vmem [shape: f32[1,128], index: 6, kind: input, shape index: {}]
  %s7 = inlined_call_operand.vmem [shape: f32[1,128], index: 7, kind: input, shape index: {}]
  %s8 = inlined_call_operand.vmem [shape: f32[1,128], index: 8, kind: input, shape index: {}]
  %s9 = inlined_call_operand.vmem [shape: bf16[128,128], index: 9, kind: input, shape index: {}]
  %s10 = inlined_call_operand.vmem [shape: f32[1,128], index: 10, kind: input, shape index: {}]
  %s11 = inlined_call_operand.vmem [shape: f32[8,128], index: 11, kind: output, shape index: {}]
  %s12 = sld [smem:[#allocation0]]
  $region75: #{forward.1} parent=0
    _
  %s14 = ssub.s32 1, %s12
  %s15 = scalar_select 0, %s14, %s12
  // Predicated region
  $region2: #{forward.1} parent=0 // pred_check
    _
  $region3: #{forward.1} parent=0 // pred_check_branch
    %17 = sbr.rel (0) target = $region5
  $region4: #{forward.1} parent=0 // pred_region
    _
  $region5: #{forward.1} parent=0 // pred_fallthru
    _
  // Predicated region
  $region6: #{forward.1} parent=0 // pred_check
    _
  $region7: #{forward.1} parent=0 // pred_check_branch
    %19 = sbr.rel (0) target = $region9
  $region8: #{forward.1} parent=0 // pred_region
    _
  $region9: #{forward.1} parent=0 // pred_fallthru
    _
  // Predicated region
  $region10: #{forward.1} parent=0 // pred_check
    _
  $region11: #{forward.1} parent=0 // pred_check_branch
    %21 = sbr.rel (0) target = $region13
  $region12: #{forward.1} parent=0 // pred_region
    _
  $region13: #{forward.1} parent=0 // pred_fallthru
    _
  // Predicated region
  $region14: #{forward.1} parent=0 // pred_check
    _
  $region15: #{forward.1} parent=0 // pred_check_branch
    %23 = sbr.rel (0) target = $region17
  $region16: #{forward.1} parent=0 // pred_region
    _
  $region17: #{forward.1} parent=0 // pred_fallthru
    _
  // Predicated region
  $region18: #{forward.1} parent=0 // pred_check
    _
  $region19: #{forward.1} parent=0 // pred_check_branch
    %25 = sbr.rel (0) target = $region21
  $region20: #{forward.1} parent=0 // pred_region
    _
  $region21: #{forward.1} parent=0 // pred_fallthru
    _
  // Predicated region
  $region22: #{forward.1} parent=0 // pred_check
    _
  $region23: #{forward.1} parent=0 // pred_check_branch
    %27 = sbr.rel (0) target = $region25
  $region24: #{forward.1} parent=0 // pred_region
    _
  $region25: #{forward.1} parent=0 // pred_fallthru
    _
  // Predicated region
  $region26: #{forward.1} parent=0 // pred_check
    _
  $region27: #{forward.1} parent=0 // pred_check_branch
    %29 = sbr.rel (0) target = $region29
  $region28: #{forward.1} parent=0 // pred_region
    _
  $region29: #{forward.1} parent=0 // pred_fallthru
    _
  // Predicated region
  $region30: #{forward.1} parent=0 // pred_check
    _
  $region31: #{forward.1} parent=0 // pred_check_branch
    %31 = sbr.rel (0) target = $region33
  $region32: #{forward.1} parent=0 // pred_region
    _
  $region33: #{forward.1} parent=0 // pred_fallthru
    _
  // Predicated region
  $region34: #{forward.1} parent=0 // pred_check
    _
  $region35: #{forward.1} parent=0 // pred_check_branch
    %33 = sbr.rel (0) target = $region37
  $region36: #{forward.1} parent=0 // pred_region
    _
  $region37: #{forward.1} parent=0 // pred_fallthru
    _
  // Predicated region
  $region38: #{forward.1} parent=0 // pred_check
    _
  $region39: #{forward.1} parent=0 // pred_check_branch
    %35 = sbr.rel (0) target = $region41
  $region40: #{forward.1} parent=0 // pred_region
    _
  $region41: #{forward.1} parent=0 // pred_fallthru
    _
  // Predicated region
  $region42: #{forward.1} parent=0 // pred_check
    _
  $region43: #{forward.1} parent=0 // pred_check_branch
    %37 = sbr.rel (0) target = $region45
  $region44: #{forward.1} parent=0 // pred_region
    _
  $region45: #{forward.1} parent=0 // pred_fallthru
    _
  %v39 = vlaneseq
  %v40 = vshrl.u32 %v39, 7
  %v41 = vadd.s32 %v40, 8
  %v42 = vadd.s32 %v40, 16
  %v43 = vadd.s32 %v40, 24
  %v44 = vadd.s32 %v40, 32
  %v45 = vadd.s32 %v40, 40
  %v46 = vadd.s32 %v40, 48
  %v47 = vadd.s32 %v40, 56
  %vm48 = vcmp.lt.s32.totalorder %v40, 0
  %v49 = vsub.s32 0, %v40
  %v50 = vsel %vm48, %v49, %v40
  %v51 = vshrl.u32 %v50, 3
  %v52 = vand.u32 %v50, 7
  %v53 = vsub.s32 0, %v52
  %v54 = vsel %vm48, %v53, %v52
  %vm55 = vcmp.lt.s32.totalorder %v41, 0
  %v56 = vsub.s32 0, %v41
  %v57 = vsel %vm55, %v56, %v41
  %v58 = vshrl.u32 %v57, 3
  %v59 = vand.u32 %v57, 7
  %v60 = vsub.s32 0, %v59
  %v61 = vsel %vm55, %v60, %v59
  %vm62 = vcmp.lt.s32.totalorder %v42, 0
  %v63 = vsub.s32 0, %v42
  %v64 = vsel %vm62, %v63, %v42
  %v65 = vshrl.u32 %v64, 3
  %v66 = vand.u32 %v64, 7
  %v67 = vsub.s32 0, %v66
  %v68 = vsel %vm62, %v67, %v66
  %vm69 = vcmp.lt.s32.totalorder %v43, 0
  %v70 = vsub.s32 0, %v43
  %v71 = vsel %vm69, %v70, %v43
  %v72 = vshrl.u32 %v71, 3
  %v73 = vand.u32 %v71, 7
  %v74 = vsub.s32 0, %v73
  %v75 = vsel %vm69, %v74, %v73
  %vm76 = vcmp.lt.s32.totalorder %v44, 0
  %v77 = vsub.s32 0, %v44
  %v78 = vsel %vm76, %v77, %v44
  %v79 = vshrl.u32 %v78, 3
  %v80 = vand.u32 %v78, 7
  %v81 = vsub.s32 0, %v80
  %v82 = vsel %vm76, %v81, %v80
  %vm83 = vcmp.lt.s32.totalorder %v45, 0
  %v84 = vsub.s32 0, %v45
  %v85 = vsel %vm83, %v84, %v45
  %v86 = vshrl.u32 %v85, 3
  %v87 = vand.u32 %v85, 7
  %v88 = vsub.s32 0, %v87
  %v89 = vsel %vm83, %v88, %v87
  %vm90 = vcmp.lt.s32.totalorder %v46, 0
  %v91 = vsub.s32 0, %v46
  %v92 = vsel %vm90, %v91, %v46
  %v93 = vshrl.u32 %v92, 3
  %v94 = vand.u32 %v92, 7
  %v95 = vsub.s32 0, %v94
  %v96 = vsel %vm90, %v95, %v94
  %vm97 = vcmp.lt.s32.totalorder %v47, 0
  %v98 = vsub.s32 0, %v47
  %v99 = vsel %vm97, %v98, %v47
  %v100 = vshrl.u32 %v99, 3
  %v101 = vand.u32 %v99, 7
  %v102 = vsub.s32 0, %v101
  %v103 = vsel %vm97, %v102, %v101
  %vm104 = vcmp.ne.s32.totalorder %v54, 0
  %vm105 = vcmp.ne.s32.totalorder %v61, 0
  %vm106 = vcmp.ne.s32.totalorder %v68, 0
  %vm107 = vcmp.ne.s32.totalorder %v75, 0
  %vm108 = vcmp.ne.s32.totalorder %v82, 0
  %vm109 = vcmp.ne.s32.totalorder %v89, 0
  %vm110 = vcmp.ne.s32.totalorder %v96, 0
  %vm111 = vcmp.ne.s32.totalorder %v103, 0
  %vm112 = vcmp.lt.s32.totalorder %v54, 0
  %vm113 = vcmp.lt.s32.totalorder %v61, 0
  %vm114 = vcmp.lt.s32.totalorder %v68, 0
  %vm115 = vcmp.lt.s32.totalorder %v75, 0
  %vm116 = vcmp.lt.s32.totalorder %v82, 0
  %vm117 = vcmp.lt.s32.totalorder %v89, 0
  %vm118 = vcmp.lt.s32.totalorder %v96, 0
  %vm119 = vcmp.lt.s32.totalorder %v103, 0
  %vm120 = vmand %vm112, %vm104
  %vm121 = vmand %vm113, %vm105
  %vm122 = vmand %vm114, %vm106
  %vm123 = vmand %vm115, %vm107
  %vm124 = vmand %vm116, %vm108
  %vm125 = vmand %vm117, %vm109
  %vm126 = vmand %vm118, %vm110
  %vm127 = vmand %vm119, %vm111
  %v128 = vadd.s32 %v54, 8
  %v129 = vadd.s32 %v61, 8
  %v130 = vadd.s32 %v68, 8
  %v131 = vadd.s32 %v75, 8
  %v132 = vadd.s32 %v82, 8
  %v133 = vadd.s32 %v89, 8
  %v134 = vadd.s32 %v96, 8
  %v135 = vadd.s32 %v103, 8
  %v136 = vsel %vm120, %v128, %v54
  %v137 = vsel %vm121, %v129, %v61
  %v138 = vsel %vm122, %v130, %v68
  %v139 = vsel %vm123, %v131, %v75
  %v140 = vsel %vm124, %v132, %v82
  %v141 = vsel %vm125, %v133, %v89
  %v142 = vsel %vm126, %v134, %v96
  %v143 = vsel %vm127, %v135, %v103
  %vm144 = vcmp.lt.s32.totalorder %v136, 2
  %vm145 = vcmp.lt.s32.totalorder %v137, 2
  %vm146 = vcmp.lt.s32.totalorder %v138, 2
  %vm147 = vcmp.lt.s32.totalorder %v139, 2
  %vm148 = vcmp.lt.s32.totalorder %v140, 2
  %vm149 = vcmp.lt.s32.totalorder %v141, 2
  %vm150 = vcmp.lt.s32.totalorder %v142, 2
  %vm151 = vcmp.lt.s32.totalorder %v143, 2
  %v152 = vld [vmem:[%s2] sm:$0x1]
  %v154 = vlaneseq
  %v155 = vshrl.u32 %v154, 7
  %v156 = vsub.s32 0, %v155
  %v157 = vrot.slane %v152, %v156
  %vm159 = vcmask 60416
  %160 = vst.msk [vmem:[#allocation2] sm:$0xf] %vm159, 0
  %161 = vst.msk [vmem:[#allocation2 + $0x4] sm:$0xf] %vm159, 0
  %162 = vst.msk [vmem:[#allocation2 + $0x8] sm:$0xf] %vm159, 0
  %163 = vst.msk [vmem:[#allocation2 + $0xc] sm:$0xf] %vm159, 0
  %164 = vst.msk [vmem:[#allocation2 + $0x10] sm:$0xf] %vm159, 0
  %165 = vst.msk [vmem:[#allocation2 + $0x14] sm:$0xf] %vm159, 0
  %166 = vst.msk [vmem:[#allocation2 + $0x18] sm:$0xf] %vm159, 0
  %167 = vst.msk [vmem:[#allocation2 + $0x1c] sm:$0xf] %vm159, 0
  %168 = vst.msk [vmem:[#allocation2 + $0x20] sm:$0xf] %vm159, 0
  %169 = vst.msk [vmem:[#allocation2 + $0x24] sm:$0xf] %vm159, 0
  %s170 = scalar_lea.vmem [#allocation2], 360
  %171 = vst.msk [vmem:[%s170] sm:$0xf] %vm159, 0
  %172 = vst.msk [vmem:[%s170 + $0x4] sm:$0xf] %vm159, 0
  %173 = vst.msk [vmem:[%s170 + $0x8] sm:$0xf] %vm159, 0
  %174 = vst.msk [vmem:[%s170 + $0xc] sm:$0xf] %vm159, 0
  %175 = vst.msk [vmem:[%s170 + $0x10] sm:$0xf] %vm159, 0
  %176 = vst.msk [vmem:[%s170 + $0x14] sm:$0xf] %vm159, 0
  %177 = vst.msk [vmem:[%s170 + $0x18] sm:$0xf] %vm159, 0
  %178 = vst.msk [vmem:[%s170 + $0x1c] sm:$0xf] %vm159, 0
  %179 = vst.msk [vmem:[%s170 + $0x20] sm:$0xf] %vm159, 0
  %180 = vst.msk [vmem:[%s170 + $0x24] sm:$0xf] %vm159, 0
  %s181 = scalar_lea.vmem [#allocation2], 40
  %182 = vst.msk [vmem:[%s181] sm:$0xf] %vm159, 0
  %183 = vst.msk [vmem:[%s181 + $0x28] sm:$0xf] %vm159, 0
  %184 = vst.msk [vmem:[%s181 + $0x50] sm:$0xf] %vm159, 0
  %185 = vst.msk [vmem:[%s181 + $0x78] sm:$0xf] %vm159, 0
  %186 = vst.msk [vmem:[%s181 + $0xa0] sm:$0xf] %vm159, 0
  %187 = vst.msk [vmem:[%s181 + $0xc8] sm:$0xf] %vm159, 0
  %188 = vst.msk [vmem:[%s181 + $0xf0] sm:$0xf] %vm159, 0
  %189 = vst.msk [vmem:[%s181 + $0x118] sm:$0xf] %vm159, 0
  %s190 = scalar_lea.vmem [#allocation2], 76
  %191 = vst.msk [vmem:[%s190] sm:$0xf] %vm159, 0
  %192 = vst.msk [vmem:[%s190 + $0x28] sm:$0xf] %vm159, 0
  %193 = vst.msk [vmem:[%s190 + $0x50] sm:$0xf] %vm159, 0
  %194 = vst.msk [vmem:[%s190 + $0x78] sm:$0xf] %vm159, 0
  %195 = vst.msk [vmem:[%s190 + $0xa0] sm:$0xf] %vm159, 0
  %196 = vst.msk [vmem:[%s190 + $0xc8] sm:$0xf] %vm159, 0
  %197 = vst.msk [vmem:[%s190 + $0xf0] sm:$0xf] %vm159, 0
  %198 = vst.msk [vmem:[%s190 + $0x118] sm:$0xf] %vm159, 0
  loop: start=0, step=1, limit=8
  $region46: #{forward.1} parent=0 // loop_pre_header
    _
  $region47: #{forward.1} parent=0 // loop_header
    %s200 = sphi 0, %s204
    %p201 = scmp.ge.s32.totalorder %s200, 8
    %v205 = vphi 0.0, %v806
    %v206 = vphi 0.0, %v828
  $region48: #{forward.1} parent=0 // loop_header_branch
    %203 = sbr.rel (%p201) target = $region52
  $region49: #{forward.1} parent=0 // loop_body
    %s207 = smul.u32 %s200, 2
    %s208 = smul.u32 %s207, 18
    %s209 = smul.addr %s208, 4
    %s210 = scalar_lea.vmem %s0, %s209
    %v211 = vld [vmem:[%s210] sm:$0xf]
    %v212 = vld [vmem:[%s210 + $0x4] sm:$0xf]
    %v213 = vld [vmem:[%s210 + $0x8] sm:$0xf]
    %v214 = vld [vmem:[%s210 + $0xc] sm:$0xf]
    %v215 = vld [vmem:[%s210 + $0x10] sm:$0xf]
    %v216 = vld [vmem:[%s210 + $0x14] sm:$0xf]
    %v217 = vld [vmem:[%s210 + $0x18] sm:$0xf]
    %v218 = vld [vmem:[%s210 + $0x1c] sm:$0xf]
    %v219 = vld [vmem:[%s210 + $0x20] sm:$0xf]
    %v220 = vld [vmem:[%s210 + $0x24] sm:$0xf]
    %v221 = vld [vmem:[%s210 + $0x28] sm:$0xf]
    %v222 = vld [vmem:[%s210 + $0x2c] sm:$0xf]
    %v223 = vld [vmem:[%s210 + $0x30] sm:$0xf]
    %v224 = vld [vmem:[%s210 + $0x34] sm:$0xf]
    %v225 = vld [vmem:[%s210 + $0x38] sm:$0xf]
    %v226 = vld [vmem:[%s210 + $0x3c] sm:$0xf]
    %v227 = vld [vmem:[%s210 + $0x40] sm:$0xf]
    %v228 = vunpack.c.l.bf16 %v211
    %v229 = vunpack.c.l.bf16 %v212
    %v230 = vunpack.c.l.bf16 %v213
    %v231 = vunpack.c.l.bf16 %v214
    %v232 = vunpack.c.l.bf16 %v215
    %v233 = vunpack.c.l.bf16 %v216
    %v234 = vunpack.c.l.bf16 %v217
    %v235 = vunpack.c.l.bf16 %v218
    %v236 = vunpack.c.l.bf16 %v219
    %v237 = vunpack.c.l.bf16 %v220
    %v238 = vunpack.c.l.bf16 %v221
    %v239 = vunpack.c.l.bf16 %v222
    %v240 = vunpack.c.l.bf16 %v223
    %v241 = vunpack.c.l.bf16 %v224
    %v242 = vunpack.c.l.bf16 %v225
    %v243 = vunpack.c.l.bf16 %v226
    %v244 = vunpack.c.l.bf16 %v227
    %s245 = sadd.s32 %s207, 1
    %s246 = smul.u32 %s245, 18
    %s247 = smul.addr %s246, 4
    %s248 = scalar_lea.vmem %s0, %s247
    %v249 = vld [vmem:[%s248] sm:$0xf]
    %v250 = vld [vmem:[%s248 + $0x4] sm:$0xf]
    %v251 = vld [vmem:[%s248 + $0x8] sm:$0xf]
    %v252 = vld [vmem:[%s248 + $0xc] sm:$0xf]
    %v253 = vld [vmem:[%s248 + $0x10] sm:$0xf]
    %v254 = vld [vmem:[%s248 + $0x14] sm:$0xf]
    %v255 = vld [vmem:[%s248 + $0x18] sm:$0xf]
    %v256 = vld [vmem:[%s248 + $0x1c] sm:$0xf]
    %v257 = vld [vmem:[%s248 + $0x20] sm:$0xf]
    %v258 = vld [vmem:[%s248 + $0x24] sm:$0xf]
    %v259 = vld [vmem:[%s248 + $0x28] sm:$0xf]
    %v260 = vld [vmem:[%s248 + $0x2c] sm:$0xf]
    %v261 = vld [vmem:[%s248 + $0x30] sm:$0xf]
    %v262 = vld [vmem:[%s248 + $0x34] sm:$0xf]
    %v263 = vld [vmem:[%s248 + $0x38] sm:$0xf]
    %v264 = vld [vmem:[%s248 + $0x3c] sm:$0xf]
    %v265 = vld [vmem:[%s248 + $0x40] sm:$0xf]
    %v266 = vunpack.c.l.bf16 %v249
    %v267 = vunpack.c.l.bf16 %v250
    %v268 = vunpack.c.l.bf16 %v251
    %v269 = vunpack.c.l.bf16 %v252
    %v270 = vunpack.c.l.bf16 %v253
    %v271 = vunpack.c.l.bf16 %v254
    %v272 = vunpack.c.l.bf16 %v255
    %v273 = vunpack.c.l.bf16 %v256
    %v274 = vunpack.c.l.bf16 %v257
    %v275 = vunpack.c.l.bf16 %v258
    %v276 = vunpack.c.l.bf16 %v259
    %v277 = vunpack.c.l.bf16 %v260
    %v278 = vunpack.c.l.bf16 %v261
    %v279 = vunpack.c.l.bf16 %v262
    %v280 = vunpack.c.l.bf16 %v263
    %v281 = vunpack.c.l.bf16 %v264
    %v282 = vunpack.c.l.bf16 %v265
    %s283 = sadd.s32 %s207, 2
    %s284 = smul.u32 %s283, 18
    %s285 = smul.addr %s284, 4
    %s286 = scalar_lea.vmem %s0, %s285
    %v287 = vld [vmem:[%s286] sm:$0xf]
    %v288 = vld [vmem:[%s286 + $0x4] sm:$0xf]
    %v289 = vld [vmem:[%s286 + $0x8] sm:$0xf]
    %v290 = vld [vmem:[%s286 + $0xc] sm:$0xf]
    %v291 = vld [vmem:[%s286 + $0x10] sm:$0xf]
    %v292 = vld [vmem:[%s286 + $0x14] sm:$0xf]
    %v293 = vld [vmem:[%s286 + $0x18] sm:$0xf]
    %v294 = vld [vmem:[%s286 + $0x1c] sm:$0xf]
    %v295 = vld [vmem:[%s286 + $0x20] sm:$0xf]
    %v296 = vld [vmem:[%s286 + $0x24] sm:$0xf]
    %v297 = vld [vmem:[%s286 + $0x28] sm:$0xf]
    %v298 = vld [vmem:[%s286 + $0x2c] sm:$0xf]
    %v299 = vld [vmem:[%s286 + $0x30] sm:$0xf]
    %v300 = vld [vmem:[%s286 + $0x34] sm:$0xf]
    %v301 = vld [vmem:[%s286 + $0x38] sm:$0xf]
    %v302 = vld [vmem:[%s286 + $0x3c] sm:$0xf]
    %v303 = vld [vmem:[%s286 + $0x40] sm:$0xf]
    %v304 = vunpack.c.l.bf16 %v287
    %v305 = vunpack.c.l.bf16 %v288
    %v306 = vunpack.c.l.bf16 %v289
    %v307 = vunpack.c.l.bf16 %v290
    %v308 = vunpack.c.l.bf16 %v291
    %v309 = vunpack.c.l.bf16 %v292
    %v310 = vunpack.c.l.bf16 %v293
    %v311 = vunpack.c.l.bf16 %v294
    %v312 = vunpack.c.l.bf16 %v295
    %v313 = vunpack.c.l.bf16 %v296
    %v314 = vunpack.c.l.bf16 %v297
    %v315 = vunpack.c.l.bf16 %v298
    %v316 = vunpack.c.l.bf16 %v299
    %v317 = vunpack.c.l.bf16 %v300
    %v318 = vunpack.c.l.bf16 %v301
    %v319 = vunpack.c.l.bf16 %v302
    %v320 = vunpack.c.l.bf16 %v303
    %329 = vrot.lane.b32.xlu0 %v229, 4
    %v330 = vpop.permute.xlu0 %329
    %331 = vrot.lane.b32.xlu0 %v231, 4
    %v332 = vpop.permute.xlu0 %331
    %333 = vrot.lane.b32.xlu0 %v233, 4
    %v334 = vpop.permute.xlu0 %333
    %335 = vrot.lane.b32.xlu0 %v235, 4
    %v336 = vpop.permute.xlu0 %335
    %337 = vrot.lane.b32.xlu0 %v237, 4
    %v338 = vpop.permute.xlu0 %337
    %339 = vrot.lane.b32.xlu0 %v239, 4
    %v340 = vpop.permute.xlu0 %339
    %341 = vrot.lane.b32.xlu0 %v241, 4
    %v342 = vpop.permute.xlu0 %341
    %343 = vrot.lane.b32.xlu0 %v243, 4
    %v344 = vpop.permute.xlu0 %343
    %361 = vrot.lane.b32.xlu0 %v230, 8
    %v362 = vpop.permute.xlu0 %361
    %363 = vrot.lane.b32.xlu0 %v232, 8
    %v364 = vpop.permute.xlu0 %363
    %365 = vrot.lane.b32.xlu0 %v234, 8
    %v366 = vpop.permute.xlu0 %365
    %367 = vrot.lane.b32.xlu0 %v236, 8
    %v368 = vpop.permute.xlu0 %367
    %369 = vrot.lane.b32.xlu0 %v238, 8
    %v370 = vpop.permute.xlu0 %369
    %371 = vrot.lane.b32.xlu0 %v240, 8
    %v372 = vpop.permute.xlu0 %371
    %373 = vrot.lane.b32.xlu0 %v242, 8
    %v374 = vpop.permute.xlu0 %373
    %375 = vrot.lane.b32.xlu0 %v244, 8
    %v376 = vpop.permute.xlu0 %375
    %393 = vrot.lane.b32.xlu0 %v266, 12
    %v394 = vpop.permute.xlu0 %393
    %395 = vrot.lane.b32.xlu0 %v268, 12
    %v396 = vpop.permute.xlu0 %395
    %397 = vrot.lane.b32.xlu0 %v270, 12
    %v398 = vpop.permute.xlu0 %397
    %399 = vrot.lane.b32.xlu0 %v272, 12
    %v400 = vpop.permute.xlu0 %399
    %401 = vrot.lane.b32.xlu0 %v274, 12
    %v402 = vpop.permute.xlu0 %401
    %403 = vrot.lane.b32.xlu0 %v276, 12
    %v404 = vpop.permute.xlu0 %403
    %405 = vrot.lane.b32.xlu0 %v278, 12
    %v406 = vpop.permute.xlu0 %405
    %407 = vrot.lane.b32.xlu0 %v280, 12
    %v408 = vpop.permute.xlu0 %407
    %425 = vrot.lane.b32.xlu0 %v267, 16
    %v426 = vpop.permute.xlu0 %425
    %427 = vrot.lane.b32.xlu0 %v269, 16
    %v428 = vpop.permute.xlu0 %427
    %429 = vrot.lane.b32.xlu0 %v271, 16
    %v430 = vpop.permute.xlu0 %429
    %431 = vrot.lane.b32.xlu0 %v273, 16
    %v432 = vpop.permute.xlu0 %431
    %433 = vrot.lane.b32.xlu0 %v275, 16
    %v434 = vpop.permute.xlu0 %433
    %435 = vrot.lane.b32.xlu0 %v277, 16
    %v436 = vpop.permute.xlu0 %435
    %437 = vrot.lane.b32.xlu0 %v279, 16
    %v438 = vpop.permute.xlu0 %437
    %439 = vrot.lane.b32.xlu0 %v281, 16
    %v440 = vpop.permute.xlu0 %439
    %450 = vrot.lane.b32.xlu0 %v268, 20
    %v451 = vpop.permute.xlu0 %450
    %452 = vrot.lane.b32.xlu0 %v270, 20
    %v453 = vpop.permute.xlu0 %452
    %454 = vrot.lane.b32.xlu0 %v272, 20
    %v455 = vpop.permute.xlu0 %454
    %456 = vrot.lane.b32.xlu0 %v274, 20
    %v457 = vpop.permute.xlu0 %456
    %458 = vrot.lane.b32.xlu0 %v276, 20
    %v459 = vpop.permute.xlu0 %458
    %460 = vrot.lane.b32.xlu0 %v278, 20
    %v461 = vpop.permute.xlu0 %460
    %462 = vrot.lane.b32.xlu0 %v280, 20
    %v463 = vpop.permute.xlu0 %462
    %464 = vrot.lane.b32.xlu0 %v282, 20
    %v465 = vpop.permute.xlu0 %464
    %482 = vrot.lane.b32.xlu0 %v304, 24
    %v483 = vpop.permute.xlu0 %482
    %484 = vrot.lane.b32.xlu0 %v306, 24
    %v485 = vpop.permute.xlu0 %484
    %486 = vrot.lane.b32.xlu0 %v308, 24
    %v487 = vpop.permute.xlu0 %486
    %488 = vrot.lane.b32.xlu0 %v310, 24
    %v489 = vpop.permute.xlu0 %488
    %490 = vrot.lane.b32.xlu0 %v312, 24
    %v491 = vpop.permute.xlu0 %490
    %492 = vrot.lane.b32.xlu0 %v314, 24
    %v493 = vpop.permute.xlu0 %492
    %494 = vrot.lane.b32.xlu0 %v316, 24
    %v495 = vpop.permute.xlu0 %494
    %496 = vrot.lane.b32.xlu0 %v318, 24
    %v497 = vpop.permute.xlu0 %496
    %514 = vrot.lane.b32.xlu0 %v305, 28
    %v515 = vpop.permute.xlu0 %514
    %516 = vrot.lane.b32.xlu0 %v307, 28
    %v517 = vpop.permute.xlu0 %516
    %518 = vrot.lane.b32.xlu0 %v309, 28
    %v519 = vpop.permute.xlu0 %518
    %520 = vrot.lane.b32.xlu0 %v311, 28
    %v521 = vpop.permute.xlu0 %520
    %522 = vrot.lane.b32.xlu0 %v313, 28
    %v523 = vpop.permute.xlu0 %522
    %524 = vrot.lane.b32.xlu0 %v315, 28
    %v525 = vpop.permute.xlu0 %524
    %526 = vrot.lane.b32.xlu0 %v317, 28
    %v527 = vpop.permute.xlu0 %526
    %528 = vrot.lane.b32.xlu0 %v319, 28
    %v529 = vpop.permute.xlu0 %528
    %539 = vrot.lane.b32.xlu0 %v306, 32
    %v540 = vpop.permute.xlu0 %539
    %541 = vrot.lane.b32.xlu0 %v308, 32
    %v542 = vpop.permute.xlu0 %541
    %543 = vrot.lane.b32.xlu0 %v310, 32
    %v544 = vpop.permute.xlu0 %543
    %545 = vrot.lane.b32.xlu0 %v312, 32
    %v546 = vpop.permute.xlu0 %545
    %547 = vrot.lane.b32.xlu0 %v314, 32
    %v548 = vpop.permute.xlu0 %547
    %549 = vrot.lane.b32.xlu0 %v316, 32
    %v550 = vpop.permute.xlu0 %549
    %551 = vrot.lane.b32.xlu0 %v318, 32
    %v552 = vpop.permute.xlu0 %551
    %553 = vrot.lane.b32.xlu0 %v320, 32
    %v554 = vpop.permute.xlu0 %553
    %vm563 = vcmask 31744
    %v564 = vsel %vm563, %v228, %v330
    %v565 = vsel %vm563, %v230, %v332
    %v566 = vsel %vm563, %v232, %v334
    %v567 = vsel %vm563, %v234, %v336
    %v568 = vsel %vm563, %v236, %v338
    %v569 = vsel %vm563, %v238, %v340
    %v570 = vsel %vm563, %v240, %v342
    %v571 = vsel %vm563, %v242, %v344
    %vm572 = vcmask 64512
    %v573 = vsel %vm572, %v564, %v362
    %v574 = vsel %vm572, %v565, %v364
    %v575 = vsel %vm572, %v566, %v366
    %v576 = vsel %vm572, %v567, %v368
    %v577 = vsel %vm572, %v568, %v370
    %v578 = vsel %vm572, %v569, %v372
    %v579 = vsel %vm572, %v570, %v374
    %v580 = vsel %vm572, %v571, %v376
    %vm581 = vcmask 97280
    %v582 = vsel %vm581, %v573, %v394
    %v583 = vsel %vm581, %v574, %v396
    %v584 = vsel %vm581, %v575, %v398
    %v585 = vsel %vm581, %v576, %v400
    %v586 = vsel %vm581, %v577, %v402
    %v587 = vsel %vm581, %v578, %v404
    %v588 = vsel %vm581, %v579, %v406
    %v589 = vsel %vm581, %v580, %v408
    %vm590 = vcmask 130048
    %v591 = vsel %vm590, %v582, %v426
    %v592 = vsel %vm590, %v583, %v428
    %v593 = vsel %vm590, %v584, %v430
    %v594 = vsel %vm590, %v585, %v432
    %v595 = vsel %vm590, %v586, %v434
    %v596 = vsel %vm590, %v587, %v436
    %v597 = vsel %vm590, %v588, %v438
    %v598 = vsel %vm590, %v589, %v440
    %vm599 = vcmask 162816
    %v600 = vsel %vm599, %v591, %v451
    %v601 = vsel %vm599, %v592, %v453
    %v602 = vsel %vm599, %v593, %v455
    %v603 = vsel %vm599, %v594, %v457
    %v604 = vsel %vm599, %v595, %v459
    %v605 = vsel %vm599, %v596, %v461
    %v606 = vsel %vm599, %v597, %v463
    %v607 = vsel %vm599, %v598, %v465
    %vm608 = vcmask 195584
    %v609 = vsel %vm608, %v600, %v483
    %v610 = vsel %vm608, %v601, %v485
    %v611 = vsel %vm608, %v602, %v487
    %v612 = vsel %vm608, %v603, %v489
    %v613 = vsel %vm608, %v604, %v491
    %v614 = vsel %vm608, %v605, %v493
    %v615 = vsel %vm608, %v606, %v495
    %v616 = vsel %vm608, %v607, %v497
    %vm617 = vcmask 228352
    %v618 = vsel %vm617, %v609, %v515
    %v619 = vsel %vm617, %v610, %v517
    %v620 = vsel %vm617, %v611, %v519
    %v621 = vsel %vm617, %v612, %v521
    %v622 = vsel %vm617, %v613, %v523
    %v623 = vsel %vm617, %v614, %v525
    %v624 = vsel %vm617, %v615, %v527
    %v625 = vsel %vm617, %v616, %v529
    %vm626 = vcmask 261120
    %v627 = vsel %vm626, %v618, %v540
    %v628 = vsel %vm626, %v619, %v542
    %v629 = vsel %vm626, %v620, %v544
    %v630 = vsel %vm626, %v621, %v546
    %v631 = vsel %vm626, %v622, %v548
    %v632 = vsel %vm626, %v623, %v550
    %v633 = vsel %vm626, %v624, %v552
    %v634 = vsel %vm626, %v625, %v554
    %vm635 = vcmask 293888
    %v636 = vsel %vm635, %v627, 0.0
    %v637 = vsel %vm635, %v628, 0.0
    %v638 = vsel %vm635, %v629, 0.0
    %v639 = vsel %vm635, %v630, 0.0
    %v640 = vsel %vm635, %v631, 0.0
    %v641 = vsel %vm635, %v632, 0.0
    %v642 = vsel %vm635, %v633, 0.0
    %v643 = vsel %vm635, %v634, 0.0
    %v644 = vpack.c.bf16 %v637, %v636
    %v645 = vpack.c.bf16 %v639, %v638
    %v646 = vpack.c.bf16 %v641, %v640
    %v647 = vpack.c.bf16 %v643, %v642
    %v648 = vld [vmem:[%s1] sm:$0xf]
    %v649 = vld [vmem:[%s1 + $0x4] sm:$0xf]
    %v650 = vld [vmem:[%s1 + $0x8] sm:$0xf]
    %v651 = vld [vmem:[%s1 + $0xc] sm:$0xf]
    %v652 = vld [vmem:[%s1 + $0x10] sm:$0xf]
    %v653 = vld [vmem:[%s1 + $0x14] sm:$0xf]
    %v654 = vld [vmem:[%s1 + $0x18] sm:$0xf]
    %v655 = vld [vmem:[%s1 + $0x1c] sm:$0xf]
    %v656 = vld [vmem:[%s1 + $0x20] sm:$0xf]
    %v657 = vld [vmem:[%s1 + $0x24] sm:$0xf]
    %v658 = vld [vmem:[%s1 + $0x28] sm:$0xf]
    %v659 = vld [vmem:[%s1 + $0x2c] sm:$0xf]
    %v660 = vld [vmem:[%s1 + $0x30] sm:$0xf]
    %v661 = vld [vmem:[%s1 + $0x34] sm:$0xf]
    %v662 = vld [vmem:[%s1 + $0x38] sm:$0xf]
    %v663 = vld [vmem:[%s1 + $0x3c] sm:$0xf]
    %v680 = vunpack.c.l.b16 %v648
    %v681 = vunpack.c.l.b16 %v649
    %v682 = vunpack.c.l.b16 %v650
    %v683 = vunpack.c.l.b16 %v651
    %v684 = vunpack.c.l.b16 %v652
    %v685 = vunpack.c.l.b16 %v653
    %v686 = vunpack.c.l.b16 %v654
    %v687 = vunpack.c.l.b16 %v655
    %v688 = vunpack.c.l.b16 %v656
    %v689 = vunpack.c.l.b16 %v657
    %v690 = vunpack.c.l.b16 %v658
    %v691 = vunpack.c.l.b16 %v659
    %v692 = vunpack.c.l.b16 %v660
    %v693 = vunpack.c.l.b16 %v661
    %v694 = vunpack.c.l.b16 %v662
    %v695 = vunpack.c.l.b16 %v663
    %v696 = vpack.c.b16 %v681, %v680
    %v697 = vpack.c.b16 %v683, %v682
    %v698 = vpack.c.b16 %v685, %v684
    %v699 = vpack.c.b16 %v687, %v686
    %v700 = vpack.c.b16 %v689, %v688
    %v701 = vpack.c.b16 %v691, %v690
    %v702 = vpack.c.b16 %v693, %v692
    %v703 = vpack.c.b16 %v695, %v694
    %712 = vmatprep.subr.bf16.mxu0 0
    %713 = vmatpush1.bf16.msra.mxu0 %v703
    %714 = vmatprep.subr.bf16.mxu0 0
    %715 = vmatpush1.bf16.msra.mxu0 %v702
    %716 = vmatprep.subr.bf16.mxu0 0
    %717 = vmatpush1.bf16.msra.mxu0 %v701
    %718 = vmatprep.subr.bf16.mxu0 0
    %719 = vmatpush1.bf16.msra.mxu0 %v700
    %720 = vmatprep.subr.bf16.mxu0 0
    %721 = vmatpush1.bf16.msra.mxu0 %v699
    %722 = vmatprep.subr.bf16.mxu0 0
    %723 = vmatpush1.bf16.msra.mxu0 %v698
    %724 = vmatprep.subr.bf16.mxu0 0
    %725 = vmatpush1.bf16.msra.mxu0 %v697
    %726 = vmatprep.subr.bf16.mxu0 0
    %727 = vmatpush1.bf16.msra.mxu0 %v696
    %728 = vmatprep.subr.bf16.mxu0 0
    %729 = vmatpush2.bf16.msra.mxu0 0
    %730 = vmatprep.subr.bf16.mxu0 0
    %731 = vmatpush2.bf16.msra.mxu0 0
    %732 = vmatprep.subr.bf16.mxu0 0
    %733 = vmatpush2.bf16.msra.mxu0 0
    %734 = vmatprep.subr.bf16.mxu0 0
    %735 = vmatpush2.bf16.msra.mxu0 0
    %736 = vmatprep.subr.bf16.mxu0 0
    %737 = vmatpush2.bf16.msra.mxu0 0
    %738 = vmatprep.subr.bf16.mxu0 0
    %739 = vmatpush2.bf16.msra.mxu0 0
    %740 = vmatprep.subr.bf16.mxu0 0
    %741 = vmatpush2.bf16.msra.mxu0 0
    %742 = vmatprep.subr.bf16.mxu0 0
    %743 = vmatpush2.bf16.msra.mxu0 0
    %744 = vmatprep.mubr.bf16.mxu0 0
    %745 = vmatmul.mubr.bf16.gmra.mxu0 %v644
    %v746 = vpop.f32.mrf.mxu0
    %v747 = vadd.f32 %v157, %v746
    %v748 = vpop.f32.mrf.mxu0
    %v749 = vpop.f32.mrf.mxu0
    %v750 = vadd.f32 %v157, %v749
    %v751 = vpop.f32.mrf.mxu0
    %752 = vmatprep.mubr.bf16.mxu0 0
    %753 = vmatmul.mubr.bf16.gmra.mxu0 %v645
    %v754 = vpop.f32.mrf.mxu0
    %v755 = vadd.f32 %v157, %v754
    %v756 = vpop.f32.mrf.mxu0
    %v757 = vpop.f32.mrf.mxu0
    %v758 = vadd.f32 %v157, %v757
    %v759 = vpop.f32.mrf.mxu0
    %760 = vmatprep.mubr.bf16.mxu0 0
    %761 = vmatmul.mubr.bf16.gmra.mxu0 %v646
    %v762 = vpop.f32.mrf.mxu0
    %v763 = vadd.f32 %v157, %v762
    %v764 = vpop.f32.mrf.mxu0
    %v765 = vpop.f32.mrf.mxu0
    %v766 = vadd.f32 %v157, %v765
    %v767 = vpop.f32.mrf.mxu0
    %768 = vmatprep.mubr.bf16.mxu0 0
    %769 = vmatmul.mubr.bf16.gmra.mxu0 %v647
    %v770 = vpop.f32.mrf.mxu0
    %v771 = vadd.f32 %v157, %v770
    %v772 = vpop.f32.mrf.mxu0
    %v773 = vpop.f32.mrf.mxu0
    %v774 = vadd.f32 %v157, %v773
    %v775 = vpop.f32.mrf.mxu0
    %776 = vdwg.mxu0
    %v777 = vmax.f32 %v747, 0.0
    %v778 = vmax.f32 %v750, 0.0
    %v779 = vmax.f32 %v755, 0.0
    %v780 = vmax.f32 %v758, 0.0
    %v781 = vmax.f32 %v763, 0.0
    %v782 = vmax.f32 %v766, 0.0
    %v783 = vmax.f32 %v771, 0.0
    %v784 = vmax.f32 %v774, 0.0
    %v785 = vsel %vm144, %v777, 0.0
    %v786 = vsel %vm145, %v778, 0.0
    %v787 = vsel %vm146, %v779, 0.0
    %v788 = vsel %vm147, %v780, 0.0
    %v789 = vsel %vm148, %v781, 0.0
    %v790 = vsel %vm149, %v782, 0.0
    %v791 = vsel %vm150, %v783, 0.0
    %v792 = vsel %vm151, %v784, 0.0
    %v793 = vadd.f32 %v785, %v786
    %v794 = vadd.f32 %v793, %v787
    %v795 = vadd.f32 %v794, %v788
    %v796 = vadd.f32 %v795, %v789
    %v797 = vadd.f32 %v796, %v790
    %v798 = vadd.f32 %v797, %v791
    %v799 = vadd.f32 %v798, %v792
    %v800 = vrot.slane %v799, 4
    %v801 = vadd.f32 %v799, %v800
    %v802 = vrot.slane %v801, 2
    %v803 = vadd.f32 %v801, %v802
    %v804 = vrot.slane %v803, 1
    %v805 = vadd.f32 %v803, %v804
    %v806 = vadd.f32 %v205, %v805
    %v807 = vmul.f32 %v785, %v785
    %v808 = vmul.f32 %v786, %v786
    %v809 = vmul.f32 %v787, %v787
    %v810 = vmul.f32 %v788, %v788
    %v811 = vmul.f32 %v789, %v789
    %v812 = vmul.f32 %v790, %v790
    %v813 = vmul.f32 %v791, %v791
    %v814 = vmul.f32 %v792, %v792
    %v815 = vadd.f32 %v807, %v808
    %v816 = vadd.f32 %v815, %v809
    %v817 = vadd.f32 %v816, %v810
    %v818 = vadd.f32 %v817, %v811
    %v819 = vadd.f32 %v818, %v812
    %v820 = vadd.f32 %v819, %v813
    %v821 = vadd.f32 %v820, %v814
    %v822 = vrot.slane %v821, 4
    %v823 = vadd.f32 %v821, %v822
    %v824 = vrot.slane %v823, 2
    %v825 = vadd.f32 %v823, %v824
    %v826 = vrot.slane %v825, 1
    %v827 = vadd.f32 %v825, %v826
    %v828 = vadd.f32 %v206, %v827
    %v829 = vpack.c.bf16 %v777, %v777
    %v830 = vpack.c.bf16 %v778, %v778
    %v831 = vpack.c.bf16 %v779, %v779
    %v832 = vpack.c.bf16 %v780, %v780
    %v833 = vpack.c.bf16 %v781, %v781
    %v834 = vpack.c.bf16 %v782, %v782
    %v835 = vpack.c.bf16 %v783, %v783
    %v836 = vpack.c.bf16 %v784, %v784
    %s837 = sadd.s32 %s200, 1
    %s838 = smul.u32 %s837, 10
    %s839 = sadd.s32 1, %s838
    %s840 = smul.addr %s839, 4
    %s841 = scalar_lea.vmem [#allocation2], %s840
    %842 = vst.msk [vmem:[%s841] sm:$0xf] %vm159, %v829
    %843 = vst.msk [vmem:[%s841 + $0x4] sm:$0xf] %vm159, %v830
    %844 = vst.msk [vmem:[%s841 + $0x8] sm:$0xf] %vm159, %v831
    %845 = vst.msk [vmem:[%s841 + $0xc] sm:$0xf] %vm159, %v832
    %846 = vst.msk [vmem:[%s841 + $0x10] sm:$0xf] %vm159, %v833
    %847 = vst.msk [vmem:[%s841 + $0x14] sm:$0xf] %vm159, %v834
    %848 = vst.msk [vmem:[%s841 + $0x18] sm:$0xf] %vm159, %v835
    %849 = vst.msk [vmem:[%s841 + $0x1c] sm:$0xf] %vm159, %v836
  $region50: #{forward.1} parent=0 // loop_footer
    %s204 = sadd.s32 1, %s200
  $region51: #{forward.1} parent=0 // loop_footer_branch
    %199 = sbr.rel target = $region47
  $region52: #{forward.1} parent=0 // loop_exit
    _
  %v850 = vmul.f32 %v205, 0.0078125
  %v851 = vmul.f32 %v206, 0.0078125
  %v852 = vmul.f32 %v850, %v850
  %v853 = vsub.f32 %v851, %v852
  %v854 = vadd.f32 %v853, 1e-05
  %v855 = vrsqrt.pop %v854
  %v856 = vld [vmem:[%s3] sm:$0x1]
  %v857 = vmul.f32 %v855, %v856
  %v858 = vld [vmem:[%s4] sm:$0x1]
  %v859 = vmul.f32 %v850, %v857
  %v860 = vsub.f32 %v858, %v859
  %v861 = vlaneseq
  %v862 = vshrl.u32 %v861, 7
  %v863 = vsub.s32 0, %v862
  %v864 = vrot.slane %v857, %v863
  %v866 = vlaneseq
  %v867 = vshrl.u32 %v866, 7
  %v868 = vsub.s32 0, %v867
  %v869 = vrot.slane %v860, %v868
  loop: start=0, step=1, limit=8
  $region53: #{forward.1} parent=0 // loop_pre_header
    _
  $region54: #{forward.1} parent=0 // loop_header
    %s872 = sphi 0, %s876
    %p873 = scmp.ge.s32.totalorder %s872, 8
  $region55: #{forward.1} parent=0 // loop_header_branch
    %875 = sbr.rel (%p873) target = $region59
  $region56: #{forward.1} parent=0 // loop_body
    %s877 = sadd.s32 %s872, 1
    %s878 = smul.u32 %s877, 10
    %s879 = sadd.s32 1, %s878
    %s880 = smul.addr %s879, 4
    %s881 = scalar_lea.vmem [#allocation2], %s880
    %v882 = vld [vmem:[%s881] sm:$0xf]
    %v883 = vld [vmem:[%s881 + $0x4] sm:$0xf]
    %v884 = vld [vmem:[%s881 + $0x8] sm:$0xf]
    %v885 = vld [vmem:[%s881 + $0xc] sm:$0xf]
    %v886 = vld [vmem:[%s881 + $0x10] sm:$0xf]
    %v887 = vld [vmem:[%s881 + $0x14] sm:$0xf]
    %v888 = vld [vmem:[%s881 + $0x18] sm:$0xf]
    %v889 = vld [vmem:[%s881 + $0x1c] sm:$0xf]
    %v890 = vunpack.c.l.bf16 %v882
    %v891 = vunpack.c.l.bf16 %v883
    %v892 = vunpack.c.l.bf16 %v884
    %v893 = vunpack.c.l.bf16 %v885
    %v894 = vunpack.c.l.bf16 %v886
    %v895 = vunpack.c.l.bf16 %v887
    %v896 = vunpack.c.l.bf16 %v888
    %v897 = vunpack.c.l.bf16 %v889
    %v898 = vmul.f32 %v890, %v864
    %v899 = vmul.f32 %v891, %v864
    %v900 = vmul.f32 %v892, %v864
    %v901 = vmul.f32 %v893, %v864
    %v902 = vmul.f32 %v894, %v864
    %v903 = vmul.f32 %v895, %v864
    %v904 = vmul.f32 %v896, %v864
    %v905 = vmul.f32 %v897, %v864
    %v906 = vadd.f32 %v898, %v869
    %v907 = vadd.f32 %v899, %v869
    %v908 = vadd.f32 %v900, %v869
    %v909 = vadd.f32 %v901, %v869
    %v910 = vadd.f32 %v902, %v869
    %v911 = vadd.f32 %v903, %v869
    %v912 = vadd.f32 %v904, %v869
    %v913 = vadd.f32 %v905, %v869
    %v914 = vpack.c.bf16 %v906, %v906
    %v915 = vpack.c.bf16 %v907, %v907
    %v916 = vpack.c.bf16 %v908, %v908
    %v917 = vpack.c.bf16 %v909, %v909
    %v918 = vpack.c.bf16 %v910, %v910
    %v919 = vpack.c.bf16 %v911, %v911
    %v920 = vpack.c.bf16 %v912, %v912
    %v921 = vpack.c.bf16 %v913, %v913
    %922 = vst.msk [vmem:[%s881] sm:$0xf] %vm159, %v914
    %923 = vst.msk [vmem:[%s881 + $0x4] sm:$0xf] %vm159, %v915
    %924 = vst.msk [vmem:[%s881 + $0x8] sm:$0xf] %vm159, %v916
    %925 = vst.msk [vmem:[%s881 + $0xc] sm:$0xf] %vm159, %v917
    %926 = vst.msk [vmem:[%s881 + $0x10] sm:$0xf] %vm159, %v918
    %927 = vst.msk [vmem:[%s881 + $0x14] sm:$0xf] %vm159, %v919
    %928 = vst.msk [vmem:[%s881 + $0x18] sm:$0xf] %vm159, %v920
    %929 = vst.msk [vmem:[%s881 + $0x1c] sm:$0xf] %vm159, %v921
  $region57: #{forward.1} parent=0 // loop_footer
    %s876 = sadd.s32 1, %s872
  $region58: #{forward.1} parent=0 // loop_footer_branch
    %871 = sbr.rel target = $region54
  $region59: #{forward.1} parent=0 // loop_exit
    _
  %v930 = vld [vmem:[%s6] sm:$0x1]
  %v932 = vlaneseq
  %v933 = vshrl.u32 %v932, 7
  %v934 = vsub.s32 0, %v933
  %v935 = vrot.slane %v930, %v934
  loop: start=0, step=1, limit=4
  $region60: #{forward.1} parent=0 // loop_pre_header
    _
  $region61: #{forward.1} parent=0 // loop_header
    %s938 = sphi 0, %s942
    %p939 = scmp.ge.s32.totalorder %s938, 4
    %v943 = vphi 0.0, %v1311
    %v944 = vphi 0.0, %v1325
    %v945 = vphi 0.0, %v1326
  $region62: #{forward.1} parent=0 // loop_header_branch
    %941 = sbr.rel (%p939) target = $region66
  $region63: #{forward.1} parent=0 // loop_body
    %s946 = smul.u32 %s938, 2
    %s947 = smul.u32 %s946, 10
    %s948 = smul.addr %s947, 4
    %s949 = scalar_lea.vmem [#allocation2], %s948
    %v950 = vld [vmem:[%s949] sm:$0xf]
    %v951 = vld [vmem:[%s949 + $0x4] sm:$0xf]
    %v952 = vld [vmem:[%s949 + $0x8] sm:$0xf]
    %v953 = vld [vmem:[%s949 + $0xc] sm:$0xf]
    %v954 = vld [vmem:[%s949 + $0x10] sm:$0xf]
    %v955 = vld [vmem:[%s949 + $0x14] sm:$0xf]
    %v956 = vld [vmem:[%s949 + $0x18] sm:$0xf]
    %v957 = vld [vmem:[%s949 + $0x1c] sm:$0xf]
    %v958 = vld [vmem:[%s949 + $0x20] sm:$0xf]
    %v959 = vunpack.c.l.bf16 %v950
    %v960 = vunpack.c.l.bf16 %v951
    %v961 = vunpack.c.l.bf16 %v952
    %v962 = vunpack.c.l.bf16 %v953
    %v963 = vunpack.c.l.bf16 %v954
    %v964 = vunpack.c.l.bf16 %v955
    %v965 = vunpack.c.l.bf16 %v956
    %v966 = vunpack.c.l.bf16 %v957
    %v967 = vunpack.c.l.bf16 %v958
    %s968 = sadd.s32 %s946, 1
    %s969 = smul.u32 %s968, 10
    %s970 = smul.addr %s969, 4
    %s971 = scalar_lea.vmem [#allocation2], %s970
    %v972 = vld [vmem:[%s971] sm:$0xf]
    %v973 = vld [vmem:[%s971 + $0x4] sm:$0xf]
    %v974 = vld [vmem:[%s971 + $0x8] sm:$0xf]
    %v975 = vld [vmem:[%s971 + $0xc] sm:$0xf]
    %v976 = vld [vmem:[%s971 + $0x10] sm:$0xf]
    %v977 = vld [vmem:[%s971 + $0x14] sm:$0xf]
    %v978 = vld [vmem:[%s971 + $0x18] sm:$0xf]
    %v979 = vld [vmem:[%s971 + $0x1c] sm:$0xf]
    %v980 = vld [vmem:[%s971 + $0x20] sm:$0xf]
    %v981 = vunpack.c.l.bf16 %v972
    %v982 = vunpack.c.l.bf16 %v973
    %v983 = vunpack.c.l.bf16 %v974
    %v984 = vunpack.c.l.bf16 %v975
    %v985 = vunpack.c.l.bf16 %v976
    %v986 = vunpack.c.l.bf16 %v977
    %v987 = vunpack.c.l.bf16 %v978
    %v988 = vunpack.c.l.bf16 %v979
    %v989 = vunpack.c.l.bf16 %v980
    %s990 = sadd.s32 %s946, 2
    %s991 = smul.u32 %s990, 10
    %s992 = smul.addr %s991, 4
    %s993 = scalar_lea.vmem [#allocation2], %s992
    %v994 = vld [vmem:[%s993] sm:$0xf]
    %v995 = vld [vmem:[%s993 + $0x4] sm:$0xf]
    %v996 = vld [vmem:[%s993 + $0x8] sm:$0xf]
    %v997 = vld [vmem:[%s993 + $0xc] sm:$0xf]
    %v998 = vld [vmem:[%s993 + $0x10] sm:$0xf]
    %v999 = vld [vmem:[%s993 + $0x14] sm:$0xf]
    %v1000 = vld [vmem:[%s993 + $0x18] sm:$0xf]
    %v1001 = vld [vmem:[%s993 + $0x1c] sm:$0xf]
    %v1002 = vld [vmem:[%s993 + $0x20] sm:$0xf]
    %v1003 = vunpack.c.l.bf16 %v994
    %v1004 = vunpack.c.l.bf16 %v995
    %v1005 = vunpack.c.l.bf16 %v996
    %v1006 = vunpack.c.l.bf16 %v997
    %v1007 = vunpack.c.l.bf16 %v998
    %v1008 = vunpack.c.l.bf16 %v999
    %v1009 = vunpack.c.l.bf16 %v1000
    %v1010 = vunpack.c.l.bf16 %v1001
    %v1011 = vunpack.c.l.bf16 %v1002
    %1016 = vrot.lane.b32.xlu0 %v960, 8
    %v1017 = vpop.permute.xlu0 %1016
    %1018 = vrot.lane.b32.xlu0 %v962, 8
    %v1019 = vpop.permute.xlu0 %1018
    %1020 = vrot.lane.b32.xlu0 %v964, 8
    %v1021 = vpop.permute.xlu0 %1020
    %1022 = vrot.lane.b32.xlu0 %v966, 8
    %v1023 = vpop.permute.xlu0 %1022
    %1032 = vrot.lane.b32.xlu0 %v961, 16
    %v1033 = vpop.permute.xlu0 %1032
    %1034 = vrot.lane.b32.xlu0 %v963, 16
    %v1035 = vpop.permute.xlu0 %1034
    %1036 = vrot.lane.b32.xlu0 %v965, 16
    %v1037 = vpop.permute.xlu0 %1036
    %1038 = vrot.lane.b32.xlu0 %v967, 16
    %v1039 = vpop.permute.xlu0 %1038
    %1048 = vrot.lane.b32.xlu0 %v981, 24
    %v1049 = vpop.permute.xlu0 %1048
    %1050 = vrot.lane.b32.xlu0 %v983, 24
    %v1051 = vpop.permute.xlu0 %1050
    %1052 = vrot.lane.b32.xlu0 %v985, 24
    %v1053 = vpop.permute.xlu0 %1052
    %1054 = vrot.lane.b32.xlu0 %v987, 24
    %v1055 = vpop.permute.xlu0 %1054
    %1064 = vrot.lane.b32.xlu0 %v982, 32
    %v1065 = vpop.permute.xlu0 %1064
    %1066 = vrot.lane.b32.xlu0 %v984, 32
    %v1067 = vpop.permute.xlu0 %1066
    %1068 = vrot.lane.b32.xlu0 %v986, 32
    %v1069 = vpop.permute.xlu0 %1068
    %1070 = vrot.lane.b32.xlu0 %v988, 32
    %v1071 = vpop.permute.xlu0 %1070
    %1077 = vrot.lane.b32.xlu0 %v983, 40
    %v1078 = vpop.permute.xlu0 %1077
    %1079 = vrot.lane.b32.xlu0 %v985, 40
    %v1080 = vpop.permute.xlu0 %1079
    %1081 = vrot.lane.b32.xlu0 %v987, 40
    %v1082 = vpop.permute.xlu0 %1081
    %1083 = vrot.lane.b32.xlu0 %v989, 40
    %v1084 = vpop.permute.xlu0 %1083
    %1093 = vrot.lane.b32.xlu0 %v1003, 48
    %v1094 = vpop.permute.xlu0 %1093
    %1095 = vrot.lane.b32.xlu0 %v1005, 48
    %v1096 = vpop.permute.xlu0 %1095
    %1097 = vrot.lane.b32.xlu0 %v1007, 48
    %v1098 = vpop.permute.xlu0 %1097
    %1099 = vrot.lane.b32.xlu0 %v1009, 48
    %v1100 = vpop.permute.xlu0 %1099
    %1109 = vrot.lane.b32.xlu0 %v1004, 56
    %v1110 = vpop.permute.xlu0 %1109
    %1111 = vrot.lane.b32.xlu0 %v1006, 56
    %v1112 = vpop.permute.xlu0 %1111
    %1113 = vrot.lane.b32.xlu0 %v1008, 56
    %v1114 = vpop.permute.xlu0 %1113
    %1115 = vrot.lane.b32.xlu0 %v1010, 56
    %v1116 = vpop.permute.xlu0 %1115
    %1122 = vrot.lane.b32.xlu0 %v1005, 64
    %v1123 = vpop.permute.xlu0 %1122
    %1124 = vrot.lane.b32.xlu0 %v1007, 64
    %v1125 = vpop.permute.xlu0 %1124
    %1126 = vrot.lane.b32.xlu0 %v1009, 64
    %v1127 = vpop.permute.xlu0 %1126
    %1128 = vrot.lane.b32.xlu0 %v1011, 64
    %v1129 = vpop.permute.xlu0 %1128
    %vm1134 = vcmask 64512
    %v1135 = vsel %vm1134, %v959, %v1017
    %v1136 = vsel %vm1134, %v961, %v1019
    %v1137 = vsel %vm1134, %v963, %v1021
    %v1138 = vsel %vm1134, %v965, %v1023
    %vm1139 = vcmask 130048
    %v1140 = vsel %vm1139, %v1135, %v1033
    %v1141 = vsel %vm1139, %v1136, %v1035
    %v1142 = vsel %vm1139, %v1137, %v1037
    %v1143 = vsel %vm1139, %v1138, %v1039
    %vm1144 = vcmask 195584
    %v1145 = vsel %vm1144, %v1140, %v1049
    %v1146 = vsel %vm1144, %v1141, %v1051
    %v1147 = vsel %vm1144, %v1142, %v1053
    %v1148 = vsel %vm1144, %v1143, %v1055
    %vm1149 = vcmask 261120
    %v1150 = vsel %vm1149, %v1145, %v1065
    %v1151 = vsel %vm1149, %v1146, %v1067
    %v1152 = vsel %vm1149, %v1147, %v1069
    %v1153 = vsel %vm1149, %v1148, %v1071
    %vm1154 = vcmask 326656
    %v1155 = vsel %vm1154, %v1150, %v1078
    %v1156 = vsel %vm1154, %v1151, %v1080
    %v1157 = vsel %vm1154, %v1152, %v1082
    %v1158 = vsel %vm1154, %v1153, %v1084
    %vm1159 = vcmask 392192
    %v1160 = vsel %vm1159, %v1155, %v1094
    %v1161 = vsel %vm1159, %v1156, %v1096
    %v1162 = vsel %vm1159, %v1157, %v1098
    %v1163 = vsel %vm1159, %v1158, %v1100
    %vm1164 = vcmask 457728
    %v1165 = vsel %vm1164, %v1160, %v1110
    %v1166 = vsel %vm1164, %v1161, %v1112
    %v1167 = vsel %vm1164, %v1162, %v1114
    %v1168 = vsel %vm1164, %v1163, %v1116
    %vm1169 = vcmask 523264
    %v1170 = vsel %vm1169, %v1165, %v1123
    %v1171 = vsel %vm1169, %v1166, %v1125
    %v1172 = vsel %vm1169, %v1167, %v1127
    %v1173 = vsel %vm1169, %v1168, %v1129
    %vm1174 = vcmask 588800
    %v1175 = vsel %vm1174, %v1170, 0.0
    %v1176 = vsel %vm1174, %v1171, 0.0
    %v1177 = vsel %vm1174, %v1172, 0.0
    %v1178 = vsel %vm1174, %v1173, 0.0
    %v1179 = vpack.c.bf16 %v1176, %v1175
    %v1180 = vpack.c.bf16 %v1178, %v1177
    %v1181 = vld [vmem:[%s5] sm:$0xf]
    %v1182 = vld [vmem:[%s5 + $0x4] sm:$0xf]
    %v1183 = vld [vmem:[%s5 + $0x8] sm:$0xf]
    %v1184 = vld [vmem:[%s5 + $0xc] sm:$0xf]
    %v1185 = vld [vmem:[%s5 + $0x10] sm:$0xf]
    %v1186 = vld [vmem:[%s5 + $0x14] sm:$0xf]
    %v1187 = vld [vmem:[%s5 + $0x18] sm:$0xf]
    %v1188 = vld [vmem:[%s5 + $0x1c] sm:$0xf]
    %v1189 = vld [vmem:[%s5 + $0x20] sm:$0xf]
    %v1190 = vld [vmem:[%s5 + $0x24] sm:$0xf]
    %v1191 = vld [vmem:[%s5 + $0x28] sm:$0xf]
    %v1192 = vld [vmem:[%s5 + $0x2c] sm:$0xf]
    %v1193 = vld [vmem:[%s5 + $0x30] sm:$0xf]
    %v1194 = vld [vmem:[%s5 + $0x34] sm:$0xf]
    %v1195 = vld [vmem:[%s5 + $0x38] sm:$0xf]
    %v1196 = vld [vmem:[%s5 + $0x3c] sm:$0xf]
    %v1213 = vunpack.c.l.b16 %v1181
    %v1214 = vunpack.c.l.b16 %v1182
    %v1215 = vunpack.c.l.b16 %v1183
    %v1216 = vunpack.c.l.b16 %v1184
    %v1217 = vunpack.c.l.b16 %v1185
    %v1218 = vunpack.c.l.b16 %v1186
    %v1219 = vunpack.c.l.b16 %v1187
    %v1220 = vunpack.c.l.b16 %v1188
    %v1221 = vunpack.c.l.b16 %v1189
    %v1222 = vunpack.c.l.b16 %v1190
    %v1223 = vunpack.c.l.b16 %v1191
    %v1224 = vunpack.c.l.b16 %v1192
    %v1225 = vunpack.c.l.b16 %v1193
    %v1226 = vunpack.c.l.b16 %v1194
    %v1227 = vunpack.c.l.b16 %v1195
    %v1228 = vunpack.c.l.b16 %v1196
    %v1229 = vpack.c.b16 %v1214, %v1213
    %v1230 = vpack.c.b16 %v1216, %v1215
    %v1231 = vpack.c.b16 %v1218, %v1217
    %v1232 = vpack.c.b16 %v1220, %v1219
    %v1233 = vpack.c.b16 %v1222, %v1221
    %v1234 = vpack.c.b16 %v1224, %v1223
    %v1235 = vpack.c.b16 %v1226, %v1225
    %v1236 = vpack.c.b16 %v1228, %v1227
    %1245 = vmatprep.subr.bf16.mxu0 0
    %1246 = vmatpush1.bf16.msra.mxu0 %v1236
    %1247 = vmatprep.subr.bf16.mxu0 0
    %1248 = vmatpush1.bf16.msra.mxu0 %v1235
    %1249 = vmatprep.subr.bf16.mxu0 0
    %1250 = vmatpush1.bf16.msra.mxu0 %v1234
    %1251 = vmatprep.subr.bf16.mxu0 0
    %1252 = vmatpush1.bf16.msra.mxu0 %v1233
    %1253 = vmatprep.subr.bf16.mxu0 0
    %1254 = vmatpush1.bf16.msra.mxu0 %v1232
    %1255 = vmatprep.subr.bf16.mxu0 0
    %1256 = vmatpush1.bf16.msra.mxu0 %v1231
    %1257 = vmatprep.subr.bf16.mxu0 0
    %1258 = vmatpush1.bf16.msra.mxu0 %v1230
    %1259 = vmatprep.subr.bf16.mxu0 0
    %1260 = vmatpush1.bf16.msra.mxu0 %v1229
    %1261 = vmatprep.subr.bf16.mxu0 0
    %1262 = vmatpush2.bf16.msra.mxu0 0
    %1263 = vmatprep.subr.bf16.mxu0 0
    %1264 = vmatpush2.bf16.msra.mxu0 0
    %1265 = vmatprep.subr.bf16.mxu0 0
    %1266 = vmatpush2.bf16.msra.mxu0 0
    %1267 = vmatprep.subr.bf16.mxu0 0
    %1268 = vmatpush2.bf16.msra.mxu0 0
    %1269 = vmatprep.subr.bf16.mxu0 0
    %1270 = vmatpush2.bf16.msra.mxu0 0
    %1271 = vmatprep.subr.bf16.mxu0 0
    %1272 = vmatpush2.bf16.msra.mxu0 0
    %1273 = vmatprep.subr.bf16.mxu0 0
    %1274 = vmatpush2.bf16.msra.mxu0 0
    %1275 = vmatprep.subr.bf16.mxu0 0
    %1276 = vmatpush2.bf16.msra.mxu0 0
    %1277 = vmatprep.mubr.bf16.mxu0 0
    %1278 = vmatmul.mubr.bf16.gmra.mxu0 %v1179
    %v1279 = vpop.f32.mrf.mxu0
    %v1280 = vadd.f32 %v935, %v1279
    %v1281 = vpop.f32.mrf.mxu0
    %v1282 = vpop.f32.mrf.mxu0
    %v1283 = vadd.f32 %v935, %v1282
    %v1284 = vpop.f32.mrf.mxu0
    %1285 = vmatprep.mubr.bf16.mxu0 0
    %1286 = vmatmul.mubr.bf16.gmra.mxu0 %v1180
    %v1287 = vpop.f32.mrf.mxu0
    %v1288 = vadd.f32 %v935, %v1287
    %v1289 = vpop.f32.mrf.mxu0
    %v1290 = vpop.f32.mrf.mxu0
    %v1291 = vadd.f32 %v935, %v1290
    %v1292 = vpop.f32.mrf.mxu0
    %1293 = vdwg.mxu0
    %v1294 = vmax.f32 %v1280, 0.0
    %v1295 = vmax.f32 %v1283, 0.0
    %v1296 = vmax.f32 %v1288, 0.0
    %v1297 = vmax.f32 %v1291, 0.0
    %v1298 = vsel %vm144, %v1294, 0.0
    %v1299 = vsel %vm145, %v1295, 0.0
    %v1300 = vsel %vm146, %v1296, 0.0
    %v1301 = vsel %vm147, %v1297, 0.0
    %v1302 = vadd.f32 %v1298, %v1299
    %v1303 = vadd.f32 %v1302, %v1300
    %v1304 = vadd.f32 %v1303, %v1301
    %v1305 = vrot.slane %v1304, 4
    %v1306 = vadd.f32 %v1304, %v1305
    %v1307 = vrot.slane %v1306, 2
    %v1308 = vadd.f32 %v1306, %v1307
    %v1309 = vrot.slane %v1308, 1
    %v1310 = vadd.f32 %v1308, %v1309
    %v1311 = vadd.f32 %v943, %v1310
    %v1312 = vmul.f32 %v1298, %v1298
    %v1313 = vmul.f32 %v1299, %v1299
    %v1314 = vmul.f32 %v1300, %v1300
    %v1315 = vmul.f32 %v1301, %v1301
    %v1316 = vadd.f32 %v1312, %v1313
    %v1317 = vadd.f32 %v1316, %v1314
    %v1318 = vadd.f32 %v1317, %v1315
    %v1319 = vrot.slane %v1318, 4
    %v1320 = vadd.f32 %v1318, %v1319
    %v1321 = vrot.slane %v1320, 2
    %v1322 = vadd.f32 %v1320, %v1321
    %v1323 = vrot.slane %v1322, 1
    %v1324 = vadd.f32 %v1322, %v1323
    %v1325 = vadd.f32 %v944, %v1324
    %v1326 = vadd.f32 %v945, %v1304
  $region64: #{forward.1} parent=0 // loop_footer
    %s942 = sadd.s32 1, %s938
  $region65: #{forward.1} parent=0 // loop_footer_branch
    %937 = sbr.rel target = $region61
  $region66: #{forward.1} parent=0 // loop_exit
    _
  %v1327 = vmul.f32 %v943, 0.03125
  %v1328 = vmul.f32 %v944, 0.03125
  %v1329 = vmul.f32 %v1327, %v1327
  %v1330 = vsub.f32 %v1328, %v1329
  %v1331 = vadd.f32 %v1330, 1e-05
  %v1332 = vrsqrt.pop %v1331
  %v1333 = vld [vmem:[%s7] sm:$0x1]
  %v1334 = vmul.f32 %v1332, %v1333
  %v1335 = vld [vmem:[%s8] sm:$0x1]
  %v1336 = vmul.f32 %v1327, %v1334
  %v1337 = vsub.f32 %v1335, %v1336
  %v1338 = vmul.f32 %v945, 0.0625
  %v1339 = vlaneseq
  %v1340 = vshrl.u32 %v1339, 7
  %v1341 = vsub.s32 0, %v1340
  %v1342 = vrot.slane %v1334, %v1341
  %v1343 = vmul.f32 %v1338, %v1342
  %v1345 = vlaneseq
  %v1346 = vshrl.u32 %v1345, 7
  %v1347 = vsub.s32 0, %v1346
  %v1348 = vrot.slane %v1337, %v1347
  %v1350 = vadd.f32 %v1343, %v1348
  %v1351 = vpack.c.bf16 %v1350, %v1350
  %v1352 = vld [vmem:[%s9] sm:$0xf]
  %v1353 = vld [vmem:[%s9 + $0x4] sm:$0xf]
  %v1354 = vld [vmem:[%s9 + $0x8] sm:$0xf]
  %v1355 = vld [vmem:[%s9 + $0xc] sm:$0xf]
  %v1356 = vld [vmem:[%s9 + $0x10] sm:$0xf]
  %v1357 = vld [vmem:[%s9 + $0x14] sm:$0xf]
  %v1358 = vld [vmem:[%s9 + $0x18] sm:$0xf]
  %v1359 = vld [vmem:[%s9 + $0x1c] sm:$0xf]
  %v1360 = vld [vmem:[%s9 + $0x20] sm:$0xf]
  %v1361 = vld [vmem:[%s9 + $0x24] sm:$0xf]
  %v1362 = vld [vmem:[%s9 + $0x28] sm:$0xf]
  %v1363 = vld [vmem:[%s9 + $0x2c] sm:$0xf]
  %v1364 = vld [vmem:[%s9 + $0x30] sm:$0xf]
  %v1365 = vld [vmem:[%s9 + $0x34] sm:$0xf]
  %v1366 = vld [vmem:[%s9 + $0x38] sm:$0xf]
  %v1367 = vld [vmem:[%s9 + $0x3c] sm:$0xf]
  %v1368 = vld [vmem:[%s10] sm:$0x1]
  %v1370 = vlaneseq
  %v1371 = vshrl.u32 %v1370, 7
  %v1372 = vsub.s32 0, %v1371
  %v1373 = vrot.slane %v1368, %v1372
  %v1391 = vunpack.c.l.b16 %v1352
  %v1392 = vunpack.c.l.b16 %v1353
  %v1393 = vunpack.c.l.b16 %v1354
  %v1394 = vunpack.c.l.b16 %v1355
  %v1395 = vunpack.c.l.b16 %v1356
  %v1396 = vunpack.c.l.b16 %v1357
  %v1397 = vunpack.c.l.b16 %v1358
  %v1398 = vunpack.c.l.b16 %v1359
  %v1399 = vunpack.c.l.b16 %v1360
  %v1400 = vunpack.c.l.b16 %v1361
  %v1401 = vunpack.c.l.b16 %v1362
  %v1402 = vunpack.c.l.b16 %v1363
  %v1403 = vunpack.c.l.b16 %v1364
  %v1404 = vunpack.c.l.b16 %v1365
  %v1405 = vunpack.c.l.b16 %v1366
  %v1406 = vunpack.c.l.b16 %v1367
  %v1407 = vpack.c.b16 %v1392, %v1391
  %v1408 = vpack.c.b16 %v1394, %v1393
  %v1409 = vpack.c.b16 %v1396, %v1395
  %v1410 = vpack.c.b16 %v1398, %v1397
  %v1411 = vpack.c.b16 %v1400, %v1399
  %v1412 = vpack.c.b16 %v1402, %v1401
  %v1413 = vpack.c.b16 %v1404, %v1403
  %v1414 = vpack.c.b16 %v1406, %v1405
  %1423 = vmatprep.subr.bf16.mxu0 0
  %1424 = vmatpush1.bf16.msra.mxu0 %v1414
  %1425 = vmatprep.subr.bf16.mxu0 0
  %1426 = vmatpush1.bf16.msra.mxu0 %v1413
  %1427 = vmatprep.subr.bf16.mxu0 0
  %1428 = vmatpush1.bf16.msra.mxu0 %v1412
  %1429 = vmatprep.subr.bf16.mxu0 0
  %1430 = vmatpush1.bf16.msra.mxu0 %v1411
  %1431 = vmatprep.subr.bf16.mxu0 0
  %1432 = vmatpush1.bf16.msra.mxu0 %v1410
  %1433 = vmatprep.subr.bf16.mxu0 0
  %1434 = vmatpush1.bf16.msra.mxu0 %v1409
  %1435 = vmatprep.subr.bf16.mxu0 0
  %1436 = vmatpush1.bf16.msra.mxu0 %v1408
  %1437 = vmatprep.subr.bf16.mxu0 0
  %1438 = vmatpush1.bf16.msra.mxu0 %v1407
  %1439 = vmatprep.subr.bf16.mxu0 0
  %1440 = vmatpush2.bf16.msra.mxu0 0
  %1441 = vmatprep.subr.bf16.mxu0 0
  %1442 = vmatpush2.bf16.msra.mxu0 0
  %1443 = vmatprep.subr.bf16.mxu0 0
  %1444 = vmatpush2.bf16.msra.mxu0 0
  %1445 = vmatprep.subr.bf16.mxu0 0
  %1446 = vmatpush2.bf16.msra.mxu0 0
  %1447 = vmatprep.subr.bf16.mxu0 0
  %1448 = vmatpush2.bf16.msra.mxu0 0
  %1449 = vmatprep.subr.bf16.mxu0 0
  %1450 = vmatpush2.bf16.msra.mxu0 0
  %1451 = vmatprep.subr.bf16.mxu0 0
  %1452 = vmatpush2.bf16.msra.mxu0 0
  %1453 = vmatprep.subr.bf16.mxu0 0
  %1454 = vmatpush2.bf16.msra.mxu0 0
  %1455 = vmatprep.mubr.bf16.mxu0 0
  %1456 = vmatmul.mubr.bf16.gmra.mxu0 %v1351
  %v1457 = vpop.f32.mrf.mxu0
  %v1458 = vadd.f32 %v1373, %v1457
  %v1459 = vpop.f32.mrf.mxu0
  %v1460 = vpop.f32.mrf.mxu0
  %v1461 = vpop.f32.mrf.mxu0
  %1462 = vdwg.mxu0
  %1463 = vst [vmem:[%s11] sm:$0xff] %v1458
  // Predicated region
  $region67: #{forward.1} parent=0 // pred_check
    _
  $region68: #{forward.1} parent=0 // pred_check_branch
    %1465 = sbr.rel (0) target = $region70
  $region69: #{forward.1} parent=0 // pred_region
    _
  $region70: #{forward.1} parent=0 // pred_fallthru
    _
  // Predicated region
  $region71: #{forward.1} parent=0 // pred_check
    _
  $region72: #{forward.1} parent=0 // pred_check_branch
    %1467 = sbr.rel (0) target = $region74
  $region73: #{forward.1} parent=0 // pred_region
    _
  $region74: #{forward.1} parent=0 // pred_fallthru
    _

</llo_original>
